<compile_context>
chip_gen: v6e
topology: v6e:2x2x1
jax: 0.10.0
libtpu: 0.0.40
codegen_flags: <defaults>
</compile_context>

<pallas_src>
import functools
import math

import jax
import jax.numpy as jnp
import numpy as np
from jax.experimental import pallas as pl
from jax.experimental.pallas import tpu as pltpu

# Plain Python float so it becomes a traced literal, not a captured constant.
_NEG_INF_FILL = -1000000000.0  # matches masked_fill_(-1e9) in the PyTorch module


def _softmax_attend(scores, v, ctx_ref, attn_ref):
    # Numerically stable softmax over the key axis — all reductions in f32.
    s_max = jnp.max(scores, axis=-1, keepdims=True)
    unnorm = jnp.exp(scores - s_max)
    denom = jnp.sum(unnorm, axis=-1, keepdims=True)
    inv = pl.reciprocal(denom, approx=True)          # EUP slot; frees the VALU
    attn = unnorm * inv                              # (Hb, TLq, Lk) f32
    # attn @ v with operands in the value dtype (bf16 inputs -> bf16 MXU), f32 acc.
    ctx = jnp.einsum(
        "bqk,bkd->bqd", attn.astype(v.dtype), v,
        preferred_element_type=jnp.float32,
    )
    attn_ref[...] = attn.astype(attn_ref.dtype)
    ctx_ref[...] = ctx.astype(ctx_ref.dtype)


def _sdpa_kernel(q_ref, k_ref, v_ref, ctx_ref, attn_ref, *, inv_scale):
    # Fold 1/sqrt(d_k) into q: Lq*Dk multiplies instead of Lq*Lk on the scores.
    q = q_ref[...] * inv_scale                       # (Hb, TLq, Dk)
    # q @ k^T; Mosaic feeds the transposed RHS to the MXU directly for this
    # contraction (no XLU transpose observed for (…, d)x(…, d) einsums).
    scores = jnp.einsum(
        "bqd,bkd->bqk", q, k_ref[...],
        preferred_element_type=jnp.float32,
    )
    _softmax_attend(scores, v_ref[...], ctx_ref, attn_ref)


def _sdpa_kernel_masked(q_ref, k_ref, v_ref, m_ref, ctx_ref, attn_ref, *, inv_scale):
    q = q_ref[...] * inv_scale
    scores = jnp.einsum(
        "bqd,bkd->bqk", q, k_ref[...],
        preferred_element_type=jnp.float32,
    )
    scores = jnp.where(m_ref[...] != 0, _NEG_INF_FILL, scores)
    _softmax_attend(scores, v_ref[...], ctx_ref, attn_ref)


def _divisors_desc(n):
    return [d for d in range(n, 0, -1) if n % d == 0]


def _choose_tiles(N, Lq, Lk, Dk, Dv, itemsize, mask_itemsize):
    """Pick (heads-per-step Hb, query tile TLq) so the per-step working set
    (double-buffered + f32 score temp) stays well under every generation's
    scoped-VMEM limit (v5e 16 MiB default, v7x 64 MiB physical)."""
    budget = 8 << 20  # per-step bytes target

    def step_bytes(hb, tlq):
        b = hb * (tlq * Dk + Lk * Dk + Lk * Dv + tlq * Dv) * itemsize  # q, k, v, ctx
        b += hb * tlq * Lk * (itemsize + mask_itemsize)                # attn out (+ mask)
        b += hb * tlq * Lk * 4                                         # f32 score temp
        return b

    # Query-tile candidates: either the full Lq (always layout-legal) or a
    # divisor that's a multiple of 32 (legal for f32/bf16/int8 tiling), <= 512.
    tlq_cands = sorted(
        {d for d in _divisors_desc(Lq) if d == Lq or (d % 32 == 0 and d <= 512)},
        reverse=True,
    )
    for tlq in tlq_cands:
        for hb in _divisors_desc(N):
            if step_bytes(hb, tlq) <= budget:
                return hb, tlq, step_bytes(hb, tlq)
    tlq = tlq_cands[-1]  # smallest legal tile; may exceed budget only for huge Lk
    return 1, tlq, step_bytes(1, tlq)


def scaled_dot_product_attention(q, k, v, attn_mask=None, dropout=None):
    """q: (..., Lq, Dk); k: (..., Lk, Dk); v: (..., Lk, Dv).

    Returns (context (..., Lq, Dv), attn (..., Lq, Lk)) like the PyTorch module.
    """
    if dropout:
        # TODO(synk): training-mode dropout on the attention weights is not
        # implemented (module is exercised with dropout=None).
        raise NotImplementedError("dropout is not supported in this kernel")

    *lead, Lq, Dk = q.shape
    Lk = k.shape[-2]
    Dv = v.shape[-1]
    lead = tuple(lead)
    N = int(np.prod(lead)) if lead else 1

    qf = q.reshape(N, Lq, Dk)
    kf = k.reshape(N, Lk, Dk)
    vf = v.reshape(N, Lk, Dv)

    inv_scale = float(1.0 / math.sqrt(Dk))
    itemsize = int(np.dtype(q.dtype).itemsize)
    mask_itemsize = 1 if attn_mask is not None else 0

    Hb, TLq, step_bytes = _choose_tiles(N, Lq, Lk, Dk, Dv, itemsize, mask_itemsize)
    grid = (N // Hb, Lq // TLq)

    in_specs = [
        pl.BlockSpec((Hb, TLq, Dk), lambda n, i: (n, i, 0)),
        pl.BlockSpec((Hb, Lk, Dk), lambda n, i: (n, 0, 0)),   # resident across i
        pl.BlockSpec((Hb, Lk, Dv), lambda n, i: (n, 0, 0)),   # resident across i
    ]
    operands = [qf, kf, vf]

    if attn_mask is None:
        kernel = functools.partial(_sdpa_kernel, inv_scale=inv_scale)
        mask_bytes = 0
    else:
        assert attn_mask.shape == lead + (Lq, Lk), "attn_mask must match scores shape"
        # int8, not int32 — 4x smaller HBM read for one of the largest streams.
        mf = (attn_mask.reshape(N, Lq, Lk) != 0).astype(jnp.int8)
        in_specs.append(pl.BlockSpec((Hb, TLq, Lk), lambda n, i: (n, i, 0)))
        operands.append(mf)
        mask_bytes = N * Lq * Lk
        kernel = functools.partial(_sdpa_kernel_masked, inv_scale=inv_scale)

    out_dtype = q.dtype  # attn written in the input dtype (matches PyTorch)
    out_shape = (
        jax.ShapeDtypeStruct((N, Lq, Dv), out_dtype),
        jax.ShapeDtypeStruct((N, Lq, Lk), out_dtype),
    )
    out_specs = (
        pl.BlockSpec((Hb, TLq, Dv), lambda n, i: (n, i, 0)),
        pl.BlockSpec((Hb, TLq, Lk), lambda n, i: (n, i, 0)),
    )

    cost = pl.CostEstimate(
        flops=N * (2 * Lq * Lk * Dk + 2 * Lq * Lk * Dv),
        transcendentals=N * Lq * Lk,
        bytes_accessed=itemsize * N * (Lq * Dk + Lk * Dk + Lk * Dv + Lq * Dv + Lq * Lk)
        + mask_bytes,
    )

    # Leave headroom under v7x's 64 MiB physical VMEM; raise v5e's 16 MiB default.
    vmem_limit = int(min(48 << 20, max(32 << 20, 3 * step_bytes)))

    ctx, attn = pl.pallas_call(
        kernel,
        out_shape=out_shape,
        grid_spec=pltpu.PrefetchScalarGridSpec(
            num_scalar_prefetch=0,
            grid=grid,
            in_specs=in_specs,
            out_specs=out_specs,
        ),
        compiler_params=pltpu.CompilerParams(
            dimension_semantics=("parallel", "parallel"),
            vmem_limit_bytes=vmem_limit,
        ),
        cost_estimate=cost,
    )(*operands)

    return ctx.reshape(lead + (Lq, Dv)), attn.reshape(lead + (Lq, Lk))


if __name__ == "__main__":
    # Small but (8,128)-aligned shapes: 2 batches x 2 heads, seq 128, d_k=d_v=128.
    B, H, Lq, Lk, Dk, Dv = 2, 2, 128, 128, 128, 128

    key = jax.random.PRNGKey(0)
    kq, kk, kv = jax.random.split(key, 3)
    q = jax.random.normal(kq, (B, H, Lq, Dk), jnp.float32)
    k = jax.random.normal(kk, (B, H, Lk, Dk), jnp.float32)
    v = jax.random.normal(kv, (B, H, Lk, Dv), jnp.float32)

    # ---- unmasked path ----
    ctx, attn = scaled_dot_product_attention(q, k, v)
    ctx = jax.block_until_ready(ctx)
    attn = jax.block_until_ready(attn)
    assert ctx.shape == (B, H, Lq, Dv) and attn.shape == (B, H, Lq, Lk)

    scale = np.sqrt(Dk)
    scores_ref = jnp.einsum("bhqd,bhkd->bhqk", q, k) / scale
    attn_ref = jax.nn.softmax(scores_ref, axis=-1)
    ctx_ref = jnp.einsum("bhqk,bhkd->bhqd", attn_ref, v)
    np.testing.assert_allclose(np.asarray(attn), np.asarray(attn_ref), rtol=1e-2, atol=1e-2)
    np.testing.assert_allclose(np.asarray(ctx), np.asarray(ctx_ref), rtol=1e-2, atol=1e-2)

    # ---- masked path (causal mask, True = masked out, filled with -1e9) ----
    causal = jnp.triu(jnp.ones((Lq, Lk), jnp.bool_), k=1)
    mask = jnp.broadcast_to(causal, (B, H, Lq, Lk))
    ctx_m, attn_m = scaled_dot_product_attention(q, k, v, attn_mask=mask)
    ctx_m = jax.block_until_ready(ctx_m)
    attn_m = jax.block_until_ready(attn_m)

    scores_m_ref = jnp.where(mask, -1000000000.0, scores_ref)
    attn_m_ref = jax.nn.softmax(scores_m_ref, axis=-1)
    ctx_m_ref = jnp.einsum("bhqk,bhkd->bhqd", attn_m_ref, v)
    np.testing.assert_allclose(np.asarray(attn_m), np.asarray(attn_m_ref), rtol=1e-2, atol=1e-2)
    np.testing.assert_allclose(np.asarray(ctx_m), np.asarray(ctx_m_ref), rtol=1e-2, atol=1e-2)

    print("KERNEL_OK")
</pallas_src>

<mosaic_0001>
module attributes {stable_mosaic.version = 11 : i64} {
  func.func @_sdpa_kernel(%arg0: i32, %arg1: i32, %arg2: memref<4x128x128xf32, #tpu.memory_space<vmem>>, %arg3: memref<4x128x128xf32, #tpu.memory_space<vmem>>, %arg4: memref<4x128x128xf32, #tpu.memory_space<vmem>>, %arg5: memref<4x128x128xf32, #tpu.memory_space<vmem>>, %arg6: memref<4x128x128xf32, #tpu.memory_space<vmem>>) attributes {dimension_semantics = [#tpu.dimension_semantics<parallel>, #tpu.dimension_semantics<parallel>], iteration_bounds = array<i64: 1, 1>, scalar_prefetch = 0 : i64, scratch_operands = 0 : i64, tpu.core_type = #tpu.core_type<tc>, window_params = [{transform_indices = @transform_0, window_bounds = array<i64: 4, 128, 128>}, {transform_indices = @transform_1, window_bounds = array<i64: 4, 128, 128>}, {transform_indices = @transform_2, window_bounds = array<i64: 4, 128, 128>}, {transform_indices = @transform_3, window_bounds = array<i64: 4, 128, 128>}, {transform_indices = @transform_4, window_bounds = array<i64: 4, 128, 128>}]} {
    %c0 = arith.constant 0 : index
    %c0_0 = arith.constant 0 : index
    %c0_1 = arith.constant 0 : index
    %0 = vector.load %arg2[%c0, %c0_0, %c0_1] : memref<4x128x128xf32, #tpu.memory_space<vmem>>, vector<4x128x128xf32>
    %cst = arith.constant 0.0883883461 : f32
    %1 = vector.broadcast %cst : f32 to vector<4x128x128xf32>
    %2 = arith.mulf %0, %1 : vector<4x128x128xf32>
    %c0_2 = arith.constant 0 : index
    %c0_3 = arith.constant 0 : index
    %c0_4 = arith.constant 0 : index
    %3 = vector.load %arg3[%c0_2, %c0_3, %c0_4] : memref<4x128x128xf32, #tpu.memory_space<vmem>>, vector<4x128x128xf32>
    "tpu.trace_start"() <{level = 10 : i32, message = "bqd,bkd->bqk"}> : () -> ()
    %cst_5 = arith.constant dense<0.000000e+00> : vector<4x128x128xf32>
    %4 = tpu.matmul %2, %3, %cst_5 {dimension_numbers = #tpu.dot_dimension_numbers<[2], [2], [1], [1], [0, 0, 0, 1, 1, 1], [0], [0]>} : vector<4x128x128xf32>, vector<4x128x128xf32>, vector<4x128x128xf32> -> vector<4x128x128xf32>
    "tpu.trace_stop"() : () -> ()
    %c0_6 = arith.constant 0 : index
    %c0_7 = arith.constant 0 : index
    %c0_8 = arith.constant 0 : index
    %5 = vector.load %arg4[%c0_6, %c0_7, %c0_8] : memref<4x128x128xf32, #tpu.memory_space<vmem>>, vector<4x128x128xf32>
    %cst_9 = arith.constant dense<0xFF800000> : vector<4x128xf32>
    %6 = vector.multi_reduction <maximumf>, %4, %cst_9 [2] : vector<4x128x128xf32> to vector<4x128xf32>
    %7 = vector.shape_cast %6 : vector<4x128xf32> to vector<4x128x1xf32>
    %8 = vector.broadcast %7 : vector<4x128x1xf32> to vector<4x128x128xf32>
    %9 = arith.subf %4, %8 : vector<4x128x128xf32>
    %10 = math.exp %9 : vector<4x128x128xf32>
    %cst_10 = arith.constant dense<0.000000e+00> : vector<4x128xf32>
    %11 = vector.multi_reduction <add>, %10, %cst_10 [2] : vector<4x128x128xf32> to vector<4x128xf32>
    %12 = vector.shape_cast %11 : vector<4x128xf32> to vector<4x128x1xf32>
    %13 = tpu.reciprocal %12 {approx = true} : vector<4x128x1xf32> -> vector<4x128x1xf32>
    %14 = vector.broadcast %13 : vector<4x128x1xf32> to vector<4x128x128xf32>
    %15 = arith.mulf %10, %14 : vector<4x128x128xf32>
    "tpu.trace_start"() <{level = 10 : i32, message = "bqk,bkd->bqd"}> : () -> ()
    %cst_11 = arith.constant dense<0.000000e+00> : vector<4x128x128xf32>
    %16 = tpu.matmul %15, %5, %cst_11 {dimension_numbers = #tpu.dot_dimension_numbers<[2], [1], [1], [2], [0, 0, 0, 1, 1, 2], [0], [0]>} : vector<4x128x128xf32>, vector<4x128x128xf32>, vector<4x128x128xf32> -> vector<4x128x128xf32>
    "tpu.trace_stop"() : () -> ()
    %c0_12 = arith.constant 0 : index
    %c0_13 = arith.constant 0 : index
    %c0_14 = arith.constant 0 : index
    %17 = vector.load %arg6[%c0_12, %c0_13, %c0_14] : memref<4x128x128xf32, #tpu.memory_space<vmem>>, vector<4x128x128xf32>
    tpu.vector_store %arg6[%c0_12, %c0_13, %c0_14], %15 {strides = array<i32>} : memref<4x128x128xf32, #tpu.memory_space<vmem>>, vector<4x128x128xf32>,
    %c0_15 = arith.constant 0 : index
    %c0_16 = arith.constant 0 : index
    %c0_17 = arith.constant 0 : index
    %18 = vector.load %arg5[%c0_15, %c0_16, %c0_17] : memref<4x128x128xf32, #tpu.memory_space<vmem>>, vector<4x128x128xf32>
    tpu.vector_store %arg5[%c0_15, %c0_16, %c0_17], %16 {strides = array<i32>} : memref<4x128x128xf32, #tpu.memory_space<vmem>>, vector<4x128x128xf32>,
    return
  }
  func.func @transform_0(%arg0: i32, %arg1: i32) -> (i32, i32, i32) {
    %c0_i32 = arith.constant 0 : i32
    %c0_i32_0 = arith.constant 0 : i32
    return %arg0, %arg1, %c0_i32 : i32, i32, i32
  }
  func.func @transform_1(%arg0: i32, %arg1: i32) -> (i32, i32, i32) {
    %c0_i32 = arith.constant 0 : i32
    %c0_i32_0 = arith.constant 0 : i32
    %c0_i32_1 = arith.constant 0 : i32
    return %arg0, %c0_i32, %c0_i32_0 : i32, i32, i32
  }
  func.func @transform_2(%arg0: i32, %arg1: i32) -> (i32, i32, i32) {
    %c0_i32 = arith.constant 0 : i32
    %c0_i32_0 = arith.constant 0 : i32
    %c0_i32_1 = arith.constant 0 : i32
    return %arg0, %c0_i32, %c0_i32_0 : i32, i32, i32
  }
  func.func @transform_3(%arg0: i32, %arg1: i32) -> (i32, i32, i32) {
    %c0_i32 = arith.constant 0 : i32
    %c0_i32_0 = arith.constant 0 : i32
    return %arg0, %arg1, %c0_i32 : i32, i32, i32
  }
  func.func @transform_4(%arg0: i32, %arg1: i32) -> (i32, i32, i32) {
    %c0_i32 = arith.constant 0 : i32
    %c0_i32_0 = arith.constant 0 : i32
    return %arg0, %arg1, %c0_i32 : i32, i32, i32
  }
}

</mosaic_0001>

<llo_original>
// kernel: tpu_custom_call.1
$region0: #{tpu_custom_call.1}
  #allocation0 [shape = 'u32[]', space=smem, size = 0x4, offset = 0x4, fixed_abs, tag = 'smem constant byte address 0x4 - core index']
  #allocation1 [shape = 'u32[144,128]{1,0:T(1,128)}', space=vmem, size = 0x12000, scoped, tag = 'internal scratch']
  %s0 = inlined_call_operand.hbm [shape: f32[4,128,128], index: 0, kind: input, shape index: {}]
  %s1 = inlined_call_operand.hbm [shape: f32[4,128,128], index: 1, kind: input, shape index: {}]
  %s2 = inlined_call_operand.hbm [shape: f32[4,128,128], index: 2, kind: input, shape index: {}]
  %s3 = inlined_call_operand.hbm [shape: f32[4,128,128], index: 3, kind: output, shape index: {0}]
  %s4 = inlined_call_operand.hbm [shape: f32[4,128,128], index: 4, kind: output, shape index: {1}]
  %5 = xla_tuple %s3, %s4
  %s6 = sld [smem:[#allocation0]]
  $region42: #{tpu_custom_call.1} parent=0
    _
  %s8 = ssub.s32 1, %s6
  %s9 = scalar_select 0, %s8, %s6
  $region1: #{tpu_custom_call.1} parent=0
    #allocation2 [shape = 'u8[262144]{0}', space=vmem, size = 0x40000, scoped, tag = 'input window, operand 0, single buffered']
    #allocation3 [shape = 's32[1]{0}', space=sflag, size = 0x4, scoped, tag = 'scoped memory for tpu_custom_call.1']
    #allocation4 [shape = 's32[1]{0}', space=sflag, size = 0x4, scoped, tag = 'scoped memory for tpu_custom_call.1']
    #allocation5 [shape = 'u8[262144]{0}', space=vmem, size = 0x40000, scoped, tag = 'input window, operand 1, single buffered']
    #allocation6 [shape = 's32[1]{0}', space=sflag, size = 0x4, scoped, tag = 'scoped memory for tpu_custom_call.1']
    #allocation7 [shape = 'u8[262144]{0}', space=vmem, size = 0x40000, scoped, tag = 'input window, operand 2, single buffered']
    #allocation8 [shape = 'u8[262144]{0}', space=vmem, size = 0x40000, scoped, tag = 'output window, operand 0, single buffered']
    #allocation9 [shape = 'u8[262144]{0}', space=vmem, size = 0x40000, scoped, tag = 'output window, operand 1, single buffered']
    #allocation10 [shape = 's32[1]{0}', space=sflag, size = 0x4, scoped, tag = 'scoped memory for tpu_custom_call.1']
    %10 = vsyncpa [#allocation3], 0
    %11 = vsyncpa [#allocation6], 0
    %12 = vsyncpa [#allocation4], 0
    %13 = vsyncpa [#allocation10], 0
    // Predicated region
    $region2: #{tpu_custom_call.1} parent=1 // pred_check
      _
    $region3: #{tpu_custom_call.1} parent=1 // pred_check_branch
      %15 = sbr.rel (0) target = $region5
    $region4: #{tpu_custom_call.1} parent=1 // pred_region
      %s17 = ssub.s32 8192, 8192
      %18 = vsyncadd [#allocation3], %s17
      %s19 = sshll.u32 [#allocation2], 4
      %s20 = int_to_ptr.vmem [resolvable:$true] %s19
      %25 = dma.hbm_to_vmem [thread:$0]  %s0, 8192, %s20, [#allocation3], 128, 128, 8
    $region5: #{tpu_custom_call.1} parent=1 // pred_fallthru
      _
    // Predicated region
    $region6: #{tpu_custom_call.1} parent=1 // pred_check
      _
    $region7: #{tpu_custom_call.1} parent=1 // pred_check_branch
      %27 = sbr.rel (0) target = $region9
    $region8: #{tpu_custom_call.1} parent=1 // pred_region
      %s29 = ssub.s32 8192, 8192
      %30 = vsyncadd [#allocation6], %s29
      %s31 = sshll.u32 [#allocation5], 4
      %s32 = int_to_ptr.vmem [resolvable:$true] %s31
      %37 = dma.hbm_to_vmem [thread:$0]  %s1, 8192, %s32, [#allocation6], 128, 128, 8
    $region9: #{tpu_custom_call.1} parent=1 // pred_fallthru
      _
    // Predicated region
    $region10: #{tpu_custom_call.1} parent=1 // pred_check
      _
    $region11: #{tpu_custom_call.1} parent=1 // pred_check_branch
      %39 = sbr.rel (0) target = $region13
    $region12: #{tpu_custom_call.1} parent=1 // pred_region
      %s41 = ssub.s32 8192, 8192
      %42 = vsyncadd [#allocation6], %s41
      %s43 = sshll.u32 [#allocation7], 4
      %s44 = int_to_ptr.vmem [resolvable:$true] %s43
      %49 = dma.hbm_to_vmem [thread:$0]  %s2, 8192, %s44, [#allocation6], 128, 128, 8
    $region13: #{tpu_custom_call.1} parent=1 // pred_fallthru
      _
    // Predicated region
    $region14: #{tpu_custom_call.1} parent=1 // pred_check
      _
    $region15: #{tpu_custom_call.1} parent=1 // pred_check_branch
      %51 = sbr.rel (0) target = $region17
    $region16: #{tpu_custom_call.1} parent=1 // pred_region
      %52 = dma.done [#allocation3], 8192
    $region17: #{tpu_custom_call.1} parent=1 // pred_fallthru
      _
    // Predicated region
    $region18: #{tpu_custom_call.1} parent=1 // pred_check
      _
    $region19: #{tpu_custom_call.1} parent=1 // pred_check_branch
      %54 = sbr.rel (0) target = $region21
    $region20: #{tpu_custom_call.1} parent=1 // pred_region
      %55 = dma.done [#allocation6], 8192
    $region21: #{tpu_custom_call.1} parent=1 // pred_fallthru
      _
    // Predicated region
    $region22: #{tpu_custom_call.1} parent=1 // pred_check
      _
    $region23: #{tpu_custom_call.1} parent=1 // pred_check_branch
      %57 = sbr.rel (0) target = $region25
    $region24: #{tpu_custom_call.1} parent=1 // pred_region
      %58 = dma.done [#allocation6], 8192
    $region25: #{tpu_custom_call.1} parent=1 // pred_fallthru
      _
    %v59 = vld [vmem:[#allocation2] sm:$0xff]
    %v60 = vld [vmem:[#allocation2 + $0x8] sm:$0xff]
    %v61 = vld [vmem:[#allocation2 + $0x10] sm:$0xff]
    %v62 = vld [vmem:[#allocation2 + $0x18] sm:$0xff]
    %v63 = vld [vmem:[#allocation2 + $0x20] sm:$0xff]
    %v64 = vld [vmem:[#allocation2 + $0x28] sm:$0xff]
    %v65 = vld [vmem:[#allocation2 + $0x30] sm:$0xff]
    %v66 = vld [vmem:[#allocation2 + $0x38] sm:$0xff]
    %v67 = vld [vmem:[#allocation2 + $0x40] sm:$0xff]
    %v68 = vld [vmem:[#allocation2 + $0x48] sm:$0xff]
    %v69 = vld [vmem:[#allocation2 + $0x50] sm:$0xff]
    %v70 = vld [vmem:[#allocation2 + $0x58] sm:$0xff]
    %v71 = vld [vmem:[#allocation2 + $0x60] sm:$0xff]
    %v72 = vld [vmem:[#allocation2 + $0x68] sm:$0xff]
    %v73 = vld [vmem:[#allocation2 + $0x70] sm:$0xff]
    %v74 = vld [vmem:[#allocation2 + $0x78] sm:$0xff]
    %v75 = vld [vmem:[#allocation2 + $0x80] sm:$0xff]
    %v76 = vld [vmem:[#allocation2 + $0x88] sm:$0xff]
    %v77 = vld [vmem:[#allocation2 + $0x90] sm:$0xff]
    %v78 = vld [vmem:[#allocation2 + $0x98] sm:$0xff]
    %v79 = vld [vmem:[#allocation2 + $0xa0] sm:$0xff]
    %v80 = vld [vmem:[#allocation2 + $0xa8] sm:$0xff]
    %v81 = vld [vmem:[#allocation2 + $0xb0] sm:$0xff]
    %v82 = vld [vmem:[#allocation2 + $0xb8] sm:$0xff]
    %v83 = vld [vmem:[#allocation2 + $0xc0] sm:$0xff]
    %v84 = vld [vmem:[#allocation2 + $0xc8] sm:$0xff]
    %v85 = vld [vmem:[#allocation2 + $0xd0] sm:$0xff]
    %v86 = vld [vmem:[#allocation2 + $0xd8] sm:$0xff]
    %v87 = vld [vmem:[#allocation2 + $0xe0] sm:$0xff]
    %v88 = vld [vmem:[#allocation2 + $0xe8] sm:$0xff]
    %v89 = vld [vmem:[#allocation2 + $0xf0] sm:$0xff]
    %v90 = vld [vmem:[#allocation2 + $0xf8] sm:$0xff]
    %v91 = vld [vmem:[#allocation2 + $0x100] sm:$0xff]
    %v92 = vld [vmem:[#allocation2 + $0x108] sm:$0xff]
    %v93 = vld [vmem:[#allocation2 + $0x110] sm:$0xff]
    %v94 = vld [vmem:[#allocation2 + $0x118] sm:$0xff]
    %v95 = vld [vmem:[#allocation2 + $0x120] sm:$0xff]
    %v96 = vld [vmem:[#allocation2 + $0x128] sm:$0xff]
    %v97 = vld [vmem:[#allocation2 + $0x130] sm:$0xff]
    %v98 = vld [vmem:[#allocation2 + $0x138] sm:$0xff]
    %v99 = vld [vmem:[#allocation2 + $0x140] sm:$0xff]
    %v100 = vld [vmem:[#allocation2 + $0x148] sm:$0xff]
    %v101 = vld [vmem:[#allocation2 + $0x150] sm:$0xff]
    %v102 = vld [vmem:[#allocation2 + $0x158] sm:$0xff]
    %v103 = vld [vmem:[#allocation2 + $0x160] sm:$0xff]
    %v104 = vld [vmem:[#allocation2 + $0x168] sm:$0xff]
    %v105 = vld [vmem:[#allocation2 + $0x170] sm:$0xff]
    %v106 = vld [vmem:[#allocation2 + $0x178] sm:$0xff]
    %v107 = vld [vmem:[#allocation2 + $0x180] sm:$0xff]
    %v108 = vld [vmem:[#allocation2 + $0x188] sm:$0xff]
    %v109 = vld [vmem:[#allocation2 + $0x190] sm:$0xff]
    %v110 = vld [vmem:[#allocation2 + $0x198] sm:$0xff]
    %v111 = vld [vmem:[#allocation2 + $0x1a0] sm:$0xff]
    %v112 = vld [vmem:[#allocation2 + $0x1a8] sm:$0xff]
    %v113 = vld [vmem:[#allocation2 + $0x1b0] sm:$0xff]
    %v114 = vld [vmem:[#allocation2 + $0x1b8] sm:$0xff]
    %v115 = vld [vmem:[#allocation2 + $0x1c0] sm:$0xff]
    %v116 = vld [vmem:[#allocation2 + $0x1c8] sm:$0xff]
    %v117 = vld [vmem:[#allocation2 + $0x1d0] sm:$0xff]
    %v118 = vld [vmem:[#allocation2 + $0x1d8] sm:$0xff]
    %v119 = vld [vmem:[#allocation2 + $0x1e0] sm:$0xff]
    %v120 = vld [vmem:[#allocation2 + $0x1e8] sm:$0xff]
    %v121 = vld [vmem:[#allocation2 + $0x1f0] sm:$0xff]
    %v122 = vld [vmem:[#allocation2 + $0x1f8] sm:$0xff]
    %v123 = vmul.f32 %v59, 0.088388346
    %v124 = vmul.f32 %v60, 0.088388346
    %v125 = vmul.f32 %v61, 0.088388346
    %v126 = vmul.f32 %v62, 0.088388346
    %v127 = vmul.f32 %v63, 0.088388346
    %v128 = vmul.f32 %v64, 0.088388346
    %v129 = vmul.f32 %v65, 0.088388346
    %v130 = vmul.f32 %v66, 0.088388346
    %v131 = vmul.f32 %v67, 0.088388346
    %v132 = vmul.f32 %v68, 0.088388346
    %v133 = vmul.f32 %v69, 0.088388346
    %v134 = vmul.f32 %v70, 0.088388346
    %v135 = vmul.f32 %v71, 0.088388346
    %v136 = vmul.f32 %v72, 0.088388346
    %v137 = vmul.f32 %v73, 0.088388346
    %v138 = vmul.f32 %v74, 0.088388346
    %v139 = vmul.f32 %v75, 0.088388346
    %v140 = vmul.f32 %v76, 0.088388346
    %v141 = vmul.f32 %v77, 0.088388346
    %v142 = vmul.f32 %v78, 0.088388346
    %v143 = vmul.f32 %v79, 0.088388346
    %v144 = vmul.f32 %v80, 0.088388346
    %v145 = vmul.f32 %v81, 0.088388346
    %v146 = vmul.f32 %v82, 0.088388346
    %v147 = vmul.f32 %v83, 0.088388346
    %v148 = vmul.f32 %v84, 0.088388346
    %v149 = vmul.f32 %v85, 0.088388346
    %v150 = vmul.f32 %v86, 0.088388346
    %v151 = vmul.f32 %v87, 0.088388346
    %v152 = vmul.f32 %v88, 0.088388346
    %v153 = vmul.f32 %v89, 0.088388346
    %v154 = vmul.f32 %v90, 0.088388346
    %v155 = vmul.f32 %v91, 0.088388346
    %v156 = vmul.f32 %v92, 0.088388346
    %v157 = vmul.f32 %v93, 0.088388346
    %v158 = vmul.f32 %v94, 0.088388346
    %v159 = vmul.f32 %v95, 0.088388346
    %v160 = vmul.f32 %v96, 0.088388346
    %v161 = vmul.f32 %v97, 0.088388346
    %v162 = vmul.f32 %v98, 0.088388346
    %v163 = vmul.f32 %v99, 0.088388346
    %v164 = vmul.f32 %v100, 0.088388346
    %v165 = vmul.f32 %v101, 0.088388346
    %v166 = vmul.f32 %v102, 0.088388346
    %v167 = vmul.f32 %v103, 0.088388346
    %v168 = vmul.f32 %v104, 0.088388346
    %v169 = vmul.f32 %v105, 0.088388346
    %v170 = vmul.f32 %v106, 0.088388346
    %v171 = vmul.f32 %v107, 0.088388346
    %v172 = vmul.f32 %v108, 0.088388346
    %v173 = vmul.f32 %v109, 0.088388346
    %v174 = vmul.f32 %v110, 0.088388346
    %v175 = vmul.f32 %v111, 0.088388346
    %v176 = vmul.f32 %v112, 0.088388346
    %v177 = vmul.f32 %v113, 0.088388346
    %v178 = vmul.f32 %v114, 0.088388346
    %v179 = vmul.f32 %v115, 0.088388346
    %v180 = vmul.f32 %v116, 0.088388346
    %v181 = vmul.f32 %v117, 0.088388346
    %v182 = vmul.f32 %v118, 0.088388346
    %v183 = vmul.f32 %v119, 0.088388346
    %v184 = vmul.f32 %v120, 0.088388346
    %v185 = vmul.f32 %v121, 0.088388346
    %v186 = vmul.f32 %v122, 0.088388346
    %v187 = vld [vmem:[#allocation5] sm:$0xff]
    %v188 = vld [vmem:[#allocation5 + $0x8] sm:$0xff]
    %v189 = vld [vmem:[#allocation5 + $0x10] sm:$0xff]
    %v190 = vld [vmem:[#allocation5 + $0x18] sm:$0xff]
    %v191 = vld [vmem:[#allocation5 + $0x20] sm:$0xff]
    %v192 = vld [vmem:[#allocation5 + $0x28] sm:$0xff]
    %v193 = vld [vmem:[#allocation5 + $0x30] sm:$0xff]
    %v194 = vld [vmem:[#allocation5 + $0x38] sm:$0xff]
    %v195 = vld [vmem:[#allocation5 + $0x40] sm:$0xff]
    %v196 = vld [vmem:[#allocation5 + $0x48] sm:$0xff]
    %v197 = vld [vmem:[#allocation5 + $0x50] sm:$0xff]
    %v198 = vld [vmem:[#allocation5 + $0x58] sm:$0xff]
    %v199 = vld [vmem:[#allocation5 + $0x60] sm:$0xff]
    %v200 = vld [vmem:[#allocation5 + $0x68] sm:$0xff]
    %v201 = vld [vmem:[#allocation5 + $0x70] sm:$0xff]
    %v202 = vld [vmem:[#allocation5 + $0x78] sm:$0xff]
    %v203 = vld [vmem:[#allocation5 + $0x80] sm:$0xff]
    %v204 = vld [vmem:[#allocation5 + $0x88] sm:$0xff]
    %v205 = vld [vmem:[#allocation5 + $0x90] sm:$0xff]
    %v206 = vld [vmem:[#allocation5 + $0x98] sm:$0xff]
    %v207 = vld [vmem:[#allocation5 + $0xa0] sm:$0xff]
    %v208 = vld [vmem:[#allocation5 + $0xa8] sm:$0xff]
    %v209 = vld [vmem:[#allocation5 + $0xb0] sm:$0xff]
    %v210 = vld [vmem:[#allocation5 + $0xb8] sm:$0xff]
    %v211 = vld [vmem:[#allocation5 + $0xc0] sm:$0xff]
    %v212 = vld [vmem:[#allocation5 + $0xc8] sm:$0xff]
    %v213 = vld [vmem:[#allocation5 + $0xd0] sm:$0xff]
    %v214 = vld [vmem:[#allocation5 + $0xd8] sm:$0xff]
    %v215 = vld [vmem:[#allocation5 + $0xe0] sm:$0xff]
    %v216 = vld [vmem:[#allocation5 + $0xe8] sm:$0xff]
    %v217 = vld [vmem:[#allocation5 + $0xf0] sm:$0xff]
    %v218 = vld [vmem:[#allocation5 + $0xf8] sm:$0xff]
    %v219 = vld [vmem:[#allocation5 + $0x100] sm:$0xff]
    %v220 = vld [vmem:[#allocation5 + $0x108] sm:$0xff]
    %v221 = vld [vmem:[#allocation5 + $0x110] sm:$0xff]
    %v222 = vld [vmem:[#allocation5 + $0x118] sm:$0xff]
    %v223 = vld [vmem:[#allocation5 + $0x120] sm:$0xff]
    %v224 = vld [vmem:[#allocation5 + $0x128] sm:$0xff]
    %v225 = vld [vmem:[#allocation5 + $0x130] sm:$0xff]
    %v226 = vld [vmem:[#allocation5 + $0x138] sm:$0xff]
    %v227 = vld [vmem:[#allocation5 + $0x140] sm:$0xff]
    %v228 = vld [vmem:[#allocation5 + $0x148] sm:$0xff]
    %v229 = vld [vmem:[#allocation5 + $0x150] sm:$0xff]
    %v230 = vld [vmem:[#allocation5 + $0x158] sm:$0xff]
    %v231 = vld [vmem:[#allocation5 + $0x160] sm:$0xff]
    %v232 = vld [vmem:[#allocation5 + $0x168] sm:$0xff]
    %v233 = vld [vmem:[#allocation5 + $0x170] sm:$0xff]
    %v234 = vld [vmem:[#allocation5 + $0x178] sm:$0xff]
    %v235 = vld [vmem:[#allocation5 + $0x180] sm:$0xff]
    %v236 = vld [vmem:[#allocation5 + $0x188] sm:$0xff]
    %v237 = vld [vmem:[#allocation5 + $0x190] sm:$0xff]
    %v238 = vld [vmem:[#allocation5 + $0x198] sm:$0xff]
    %v239 = vld [vmem:[#allocation5 + $0x1a0] sm:$0xff]
    %v240 = vld [vmem:[#allocation5 + $0x1a8] sm:$0xff]
    %v241 = vld [vmem:[#allocation5 + $0x1b0] sm:$0xff]
    %v242 = vld [vmem:[#allocation5 + $0x1b8] sm:$0xff]
    %v243 = vld [vmem:[#allocation5 + $0x1c0] sm:$0xff]
    %v244 = vld [vmem:[#allocation5 + $0x1c8] sm:$0xff]
    %v245 = vld [vmem:[#allocation5 + $0x1d0] sm:$0xff]
    %v246 = vld [vmem:[#allocation5 + $0x1d8] sm:$0xff]
    %v247 = vld [vmem:[#allocation5 + $0x1e0] sm:$0xff]
    %v248 = vld [vmem:[#allocation5 + $0x1e8] sm:$0xff]
    %v249 = vld [vmem:[#allocation5 + $0x1f0] sm:$0xff]
    %v250 = vld [vmem:[#allocation5 + $0x1f8] sm:$0xff]
    %251 = vmatprep.subr.mxu0 0.0
    %252 = vmatpush1.xpose.msra.mxu0 %v202
    %253 = vmatprep.subr.mxu0 0.0
    %254 = vmatpush1.xpose.msra.mxu0 %v201
    %255 = vmatprep.subr.mxu0 0.0
    %256 = vmatpush1.xpose.msra.mxu0 %v200
    %257 = vmatprep.subr.mxu0 0.0
    %258 = vmatpush1.xpose.msra.mxu0 %v199
    %259 = vmatprep.subr.mxu0 0.0
    %260 = vmatpush1.xpose.msra.mxu0 %v198
    %261 = vmatprep.subr.mxu0 0.0
    %262 = vmatpush1.xpose.msra.mxu0 %v197
    %263 = vmatprep.subr.mxu0 0.0
    %264 = vmatpush1.xpose.msra.mxu0 %v196
    %265 = vmatprep.subr.mxu0 0.0
    %266 = vmatpush1.xpose.msra.mxu0 %v195
    %267 = vmatprep.subr.mxu0 0.0
    %268 = vmatpush1.xpose.msra.mxu0 %v194
    %269 = vmatprep.subr.mxu0 0.0
    %270 = vmatpush1.xpose.msra.mxu0 %v193
    %271 = vmatprep.subr.mxu0 0.0
    %272 = vmatpush1.xpose.msra.mxu0 %v192
    %273 = vmatprep.subr.mxu0 0.0
    %274 = vmatpush1.xpose.msra.mxu0 %v191
    %275 = vmatprep.subr.mxu0 0.0
    %276 = vmatpush1.xpose.msra.mxu0 %v190
    %277 = vmatprep.subr.mxu0 0.0
    %278 = vmatpush1.xpose.msra.mxu0 %v189
    %279 = vmatprep.subr.mxu0 0.0
    %280 = vmatpush1.xpose.msra.mxu0 %v188
    %281 = vmatprep.subr.mxu0 0.0
    %282 = vmatpush1.xpose.msra.mxu0 %v187
    %283 = vmatprep.subr.mxu0 0.0
    %284 = vmatpush2.xpose.msra.mxu0 0.0
    %285 = vmatprep.subr.mxu0 0.0
    %286 = vmatpush2.xpose.msra.mxu0 0.0
    %287 = vmatprep.subr.mxu0 0.0
    %288 = vmatpush2.xpose.msra.mxu0 0.0
    %289 = vmatprep.subr.mxu0 0.0
    %290 = vmatpush2.xpose.msra.mxu0 0.0
    %291 = vmatprep.subr.mxu0 0.0
    %292 = vmatpush2.xpose.msra.mxu0 0.0
    %293 = vmatprep.subr.mxu0 0.0
    %294 = vmatpush2.xpose.msra.mxu0 0.0
    %295 = vmatprep.subr.mxu0 0.0
    %296 = vmatpush2.xpose.msra.mxu0 0.0
    %297 = vmatprep.subr.mxu0 0.0
    %298 = vmatpush2.xpose.msra.mxu0 0.0
    %299 = vmatprep.subr.mxu0 0.0
    %300 = vmatpush2.xpose.msra.mxu0 0.0
    %301 = vmatprep.subr.mxu0 0.0
    %302 = vmatpush2.xpose.msra.mxu0 0.0
    %303 = vmatprep.subr.mxu0 0.0
    %304 = vmatpush2.xpose.msra.mxu0 0.0
    %305 = vmatprep.subr.mxu0 0.0
    %306 = vmatpush2.xpose.msra.mxu0 0.0
    %307 = vmatprep.subr.mxu0 0.0
    %308 = vmatpush2.xpose.msra.mxu0 0.0
    %309 = vmatprep.subr.mxu0 0.0
    %310 = vmatpush2.xpose.msra.mxu0 0.0
    %311 = vmatprep.subr.mxu0 0.0
    %312 = vmatpush2.xpose.msra.mxu0 0.0
    %313 = vmatprep.subr.mxu0 0.0
    %314 = vmatpush2.xpose.msra.mxu0 0.0
    %315 = vmatprep.mubr.f32.mxu0 0.0
    %316 = vmatmul.mubr.f32.gmra.mxu0 %v123
    %v317 = vpop.f32.mrf.mxu0
    %v318 = vadd.f32 0.0, %v317
    %v319 = vpop.f32.mrf.mxu0
    %320 = vmatprep.mubr.f32.mxu0 0.0
    %321 = vmatmul.mubr.f32.gmra.mxu0 %v124
    %v322 = vpop.f32.mrf.mxu0
    %v323 = vadd.f32 0.0, %v322
    %v324 = vpop.f32.mrf.mxu0
    %325 = vmatprep.mubr.f32.mxu0 0.0
    %326 = vmatmul.mubr.f32.gmra.mxu0 %v125
    %v327 = vpop.f32.mrf.mxu0
    %v328 = vadd.f32 0.0, %v327
    %v329 = vpop.f32.mrf.mxu0
    %330 = vmatprep.mubr.f32.mxu0 0.0
    %331 = vmatmul.mubr.f32.gmra.mxu0 %v126
    %v332 = vpop.f32.mrf.mxu0
    %v333 = vadd.f32 0.0, %v332
    %v334 = vpop.f32.mrf.mxu0
    %335 = vmatprep.mubr.f32.mxu0 0.0
    %336 = vmatmul.mubr.f32.gmra.mxu0 %v127
    %v337 = vpop.f32.mrf.mxu0
    %v338 = vadd.f32 0.0, %v337
    %v339 = vpop.f32.mrf.mxu0
    %340 = vmatprep.mubr.f32.mxu0 0.0
    %341 = vmatmul.mubr.f32.gmra.mxu0 %v128
    %v342 = vpop.f32.mrf.mxu0
    %v343 = vadd.f32 0.0, %v342
    %v344 = vpop.f32.mrf.mxu0
    %345 = vmatprep.mubr.f32.mxu0 0.0
    %346 = vmatmul.mubr.f32.gmra.mxu0 %v129
    %v347 = vpop.f32.mrf.mxu0
    %v348 = vadd.f32 0.0, %v347
    %v349 = vpop.f32.mrf.mxu0
    %350 = vmatprep.mubr.f32.mxu0 0.0
    %351 = vmatmul.mubr.f32.gmra.mxu0 %v130
    %v352 = vpop.f32.mrf.mxu0
    %v353 = vadd.f32 0.0, %v352
    %v354 = vpop.f32.mrf.mxu0
    %355 = vmatprep.mubr.f32.mxu0 0.0
    %356 = vmatmul.mubr.f32.gmra.mxu0 %v131
    %v357 = vpop.f32.mrf.mxu0
    %v358 = vadd.f32 0.0, %v357
    %v359 = vpop.f32.mrf.mxu0
    %360 = vmatprep.mubr.f32.mxu0 0.0
    %361 = vmatmul.mubr.f32.gmra.mxu0 %v132
    %v362 = vpop.f32.mrf.mxu0
    %v363 = vadd.f32 0.0, %v362
    %v364 = vpop.f32.mrf.mxu0
    %365 = vmatprep.mubr.f32.mxu0 0.0
    %366 = vmatmul.mubr.f32.gmra.mxu0 %v133
    %v367 = vpop.f32.mrf.mxu0
    %v368 = vadd.f32 0.0, %v367
    %v369 = vpop.f32.mrf.mxu0
    %370 = vmatprep.mubr.f32.mxu0 0.0
    %371 = vmatmul.mubr.f32.gmra.mxu0 %v134
    %v372 = vpop.f32.mrf.mxu0
    %v373 = vadd.f32 0.0, %v372
    %v374 = vpop.f32.mrf.mxu0
    %375 = vmatprep.mubr.f32.mxu0 0.0
    %376 = vmatmul.mubr.f32.gmra.mxu0 %v135
    %v377 = vpop.f32.mrf.mxu0
    %v378 = vadd.f32 0.0, %v377
    %v379 = vpop.f32.mrf.mxu0
    %380 = vmatprep.mubr.f32.mxu0 0.0
    %381 = vmatmul.mubr.f32.gmra.mxu0 %v136
    %v382 = vpop.f32.mrf.mxu0
    %v383 = vadd.f32 0.0, %v382
    %v384 = vpop.f32.mrf.mxu0
    %385 = vmatprep.mubr.f32.mxu0 0.0
    %386 = vmatmul.mubr.f32.gmra.mxu0 %v137
    %v387 = vpop.f32.mrf.mxu0
    %v388 = vadd.f32 0.0, %v387
    %v389 = vpop.f32.mrf.mxu0
    %390 = vmatprep.mubr.f32.mxu0 0.0
    %391 = vmatmul.mubr.f32.gmra.mxu0 %v138
    %v392 = vpop.f32.mrf.mxu0
    %v393 = vadd.f32 0.0, %v392
    %v394 = vpop.f32.mrf.mxu0
    %395 = vdwg.mxu0
    %396 = vmatprep.subr.mxu0 0.0
    %397 = vmatpush1.xpose.msra.mxu0 %v218
    %398 = vmatprep.subr.mxu0 0.0
    %399 = vmatpush1.xpose.msra.mxu0 %v217
    %400 = vmatprep.subr.mxu0 0.0
    %401 = vmatpush1.xpose.msra.mxu0 %v216
    %402 = vmatprep.subr.mxu0 0.0
    %403 = vmatpush1.xpose.msra.mxu0 %v215
    %404 = vmatprep.subr.mxu0 0.0
    %405 = vmatpush1.xpose.msra.mxu0 %v214
    %406 = vmatprep.subr.mxu0 0.0
    %407 = vmatpush1.xpose.msra.mxu0 %v213
    %408 = vmatprep.subr.mxu0 0.0
    %409 = vmatpush1.xpose.msra.mxu0 %v212
    %410 = vmatprep.subr.mxu0 0.0
    %411 = vmatpush1.xpose.msra.mxu0 %v211
    %412 = vmatprep.subr.mxu0 0.0
    %413 = vmatpush1.xpose.msra.mxu0 %v210
    %414 = vmatprep.subr.mxu0 0.0
    %415 = vmatpush1.xpose.msra.mxu0 %v209
    %416 = vmatprep.subr.mxu0 0.0
    %417 = vmatpush1.xpose.msra.mxu0 %v208
    %418 = vmatprep.subr.mxu0 0.0
    %419 = vmatpush1.xpose.msra.mxu0 %v207
    %420 = vmatprep.subr.mxu0 0.0
    %421 = vmatpush1.xpose.msra.mxu0 %v206
    %422 = vmatprep.subr.mxu0 0.0
    %423 = vmatpush1.xpose.msra.mxu0 %v205
    %424 = vmatprep.subr.mxu0 0.0
    %425 = vmatpush1.xpose.msra.mxu0 %v204
    %426 = vmatprep.subr.mxu0 0.0
    %427 = vmatpush1.xpose.msra.mxu0 %v203
    %428 = vmatprep.subr.mxu0 0.0
    %429 = vmatpush2.xpose.msra.mxu0 0.0
    %430 = vmatprep.subr.mxu0 0.0
    %431 = vmatpush2.xpose.msra.mxu0 0.0
    %432 = vmatprep.subr.mxu0 0.0
    %433 = vmatpush2.xpose.msra.mxu0 0.0
    %434 = vmatprep.subr.mxu0 0.0
    %435 = vmatpush2.xpose.msra.mxu0 0.0
    %436 = vmatprep.subr.mxu0 0.0
    %437 = vmatpush2.xpose.msra.mxu0 0.0
    %438 = vmatprep.subr.mxu0 0.0
    %439 = vmatpush2.xpose.msra.mxu0 0.0
    %440 = vmatprep.subr.mxu0 0.0
    %441 = vmatpush2.xpose.msra.mxu0 0.0
    %442 = vmatprep.subr.mxu0 0.0
    %443 = vmatpush2.xpose.msra.mxu0 0.0
    %444 = vmatprep.subr.mxu0 0.0
    %445 = vmatpush2.xpose.msra.mxu0 0.0
    %446 = vmatprep.subr.mxu0 0.0
    %447 = vmatpush2.xpose.msra.mxu0 0.0
    %448 = vmatprep.subr.mxu0 0.0
    %449 = vmatpush2.xpose.msra.mxu0 0.0
    %450 = vmatprep.subr.mxu0 0.0
    %451 = vmatpush2.xpose.msra.mxu0 0.0
    %452 = vmatprep.subr.mxu0 0.0
    %453 = vmatpush2.xpose.msra.mxu0 0.0
    %454 = vmatprep.subr.mxu0 0.0
    %455 = vmatpush2.xpose.msra.mxu0 0.0
    %456 = vmatprep.subr.mxu0 0.0
    %457 = vmatpush2.xpose.msra.mxu0 0.0
    %458 = vmatprep.subr.mxu0 0.0
    %459 = vmatpush2.xpose.msra.mxu0 0.0
    %460 = vmatprep.mubr.f32.mxu0 0.0
    %461 = vmatmul.mubr.f32.gmra.mxu0 %v139
    %v462 = vpop.f32.mrf.mxu0
    %v463 = vadd.f32 0.0, %v462
    %v464 = vpop.f32.mrf.mxu0
    %465 = vmatprep.mubr.f32.mxu0 0.0
    %466 = vmatmul.mubr.f32.gmra.mxu0 %v140
    %v467 = vpop.f32.mrf.mxu0
    %v468 = vadd.f32 0.0, %v467
    %v469 = vpop.f32.mrf.mxu0
    %470 = vmatprep.mubr.f32.mxu0 0.0
    %471 = vmatmul.mubr.f32.gmra.mxu0 %v141
    %v472 = vpop.f32.mrf.mxu0
    %v473 = vadd.f32 0.0, %v472
    %v474 = vpop.f32.mrf.mxu0
    %475 = vmatprep.mubr.f32.mxu0 0.0
    %476 = vmatmul.mubr.f32.gmra.mxu0 %v142
    %v477 = vpop.f32.mrf.mxu0
    %v478 = vadd.f32 0.0, %v477
    %v479 = vpop.f32.mrf.mxu0
    %480 = vmatprep.mubr.f32.mxu0 0.0
    %481 = vmatmul.mubr.f32.gmra.mxu0 %v143
    %v482 = vpop.f32.mrf.mxu0
    %v483 = vadd.f32 0.0, %v482
    %v484 = vpop.f32.mrf.mxu0
    %485 = vmatprep.mubr.f32.mxu0 0.0
    %486 = vmatmul.mubr.f32.gmra.mxu0 %v144
    %v487 = vpop.f32.mrf.mxu0
    %v488 = vadd.f32 0.0, %v487
    %v489 = vpop.f32.mrf.mxu0
    %490 = vmatprep.mubr.f32.mxu0 0.0
    %491 = vmatmul.mubr.f32.gmra.mxu0 %v145
    %v492 = vpop.f32.mrf.mxu0
    %v493 = vadd.f32 0.0, %v492
    %v494 = vpop.f32.mrf.mxu0
    %495 = vmatprep.mubr.f32.mxu0 0.0
    %496 = vmatmul.mubr.f32.gmra.mxu0 %v146
    %v497 = vpop.f32.mrf.mxu0
    %v498 = vadd.f32 0.0, %v497
    %v499 = vpop.f32.mrf.mxu0
    %500 = vmatprep.mubr.f32.mxu0 0.0
    %501 = vmatmul.mubr.f32.gmra.mxu0 %v147
    %v502 = vpop.f32.mrf.mxu0
    %v503 = vadd.f32 0.0, %v502
    %v504 = vpop.f32.mrf.mxu0
    %505 = vmatprep.mubr.f32.mxu0 0.0
    %506 = vmatmul.mubr.f32.gmra.mxu0 %v148
    %v507 = vpop.f32.mrf.mxu0
    %v508 = vadd.f32 0.0, %v507
    %v509 = vpop.f32.mrf.mxu0
    %510 = vmatprep.mubr.f32.mxu0 0.0
    %511 = vmatmul.mubr.f32.gmra.mxu0 %v149
    %v512 = vpop.f32.mrf.mxu0
    %v513 = vadd.f32 0.0, %v512
    %v514 = vpop.f32.mrf.mxu0
    %515 = vmatprep.mubr.f32.mxu0 0.0
    %516 = vmatmul.mubr.f32.gmra.mxu0 %v150
    %v517 = vpop.f32.mrf.mxu0
    %v518 = vadd.f32 0.0, %v517
    %v519 = vpop.f32.mrf.mxu0
    %520 = vmatprep.mubr.f32.mxu0 0.0
    %521 = vmatmul.mubr.f32.gmra.mxu0 %v151
    %v522 = vpop.f32.mrf.mxu0
    %v523 = vadd.f32 0.0, %v522
    %v524 = vpop.f32.mrf.mxu0
    %525 = vmatprep.mubr.f32.mxu0 0.0
    %526 = vmatmul.mubr.f32.gmra.mxu0 %v152
    %v527 = vpop.f32.mrf.mxu0
    %v528 = vadd.f32 0.0, %v527
    %v529 = vpop.f32.mrf.mxu0
    %530 = vmatprep.mubr.f32.mxu0 0.0
    %531 = vmatmul.mubr.f32.gmra.mxu0 %v153
    %v532 = vpop.f32.mrf.mxu0
    %v533 = vadd.f32 0.0, %v532
    %v534 = vpop.f32.mrf.mxu0
    %535 = vmatprep.mubr.f32.mxu0 0.0
    %536 = vmatmul.mubr.f32.gmra.mxu0 %v154
    %v537 = vpop.f32.mrf.mxu0
    %v538 = vadd.f32 0.0, %v537
    %v539 = vpop.f32.mrf.mxu0
    %540 = vdwg.mxu0
    %541 = vmatprep.subr.mxu0 0.0
    %542 = vmatpush1.xpose.msra.mxu0 %v234
    %543 = vmatprep.subr.mxu0 0.0
    %544 = vmatpush1.xpose.msra.mxu0 %v233
    %545 = vmatprep.subr.mxu0 0.0
    %546 = vmatpush1.xpose.msra.mxu0 %v232
    %547 = vmatprep.subr.mxu0 0.0
    %548 = vmatpush1.xpose.msra.mxu0 %v231
    %549 = vmatprep.subr.mxu0 0.0
    %550 = vmatpush1.xpose.msra.mxu0 %v230
    %551 = vmatprep.subr.mxu0 0.0
    %552 = vmatpush1.xpose.msra.mxu0 %v229
    %553 = vmatprep.subr.mxu0 0.0
    %554 = vmatpush1.xpose.msra.mxu0 %v228
    %555 = vmatprep.subr.mxu0 0.0
    %556 = vmatpush1.xpose.msra.mxu0 %v227
    %557 = vmatprep.subr.mxu0 0.0
    %558 = vmatpush1.xpose.msra.mxu0 %v226
    %559 = vmatprep.subr.mxu0 0.0
    %560 = vmatpush1.xpose.msra.mxu0 %v225
    %561 = vmatprep.subr.mxu0 0.0
    %562 = vmatpush1.xpose.msra.mxu0 %v224
    %563 = vmatprep.subr.mxu0 0.0
    %564 = vmatpush1.xpose.msra.mxu0 %v223
    %565 = vmatprep.subr.mxu0 0.0
    %566 = vmatpush1.xpose.msra.mxu0 %v222
    %567 = vmatprep.subr.mxu0 0.0
    %568 = vmatpush1.xpose.msra.mxu0 %v221
    %569 = vmatprep.subr.mxu0 0.0
    %570 = vmatpush1.xpose.msra.mxu0 %v220
    %571 = vmatprep.subr.mxu0 0.0
    %572 = vmatpush1.xpose.msra.mxu0 %v219
    %573 = vmatprep.subr.mxu0 0.0
    %574 = vmatpush2.xpose.msra.mxu0 0.0
    %575 = vmatprep.subr.mxu0 0.0
    %576 = vmatpush2.xpose.msra.mxu0 0.0
    %577 = vmatprep.subr.mxu0 0.0
    %578 = vmatpush2.xpose.msra.mxu0 0.0
    %579 = vmatprep.subr.mxu0 0.0
    %580 = vmatpush2.xpose.msra.mxu0 0.0
    %581 = vmatprep.subr.mxu0 0.0
    %582 = vmatpush2.xpose.msra.mxu0 0.0
    %583 = vmatprep.subr.mxu0 0.0
    %584 = vmatpush2.xpose.msra.mxu0 0.0
    %585 = vmatprep.subr.mxu0 0.0
    %586 = vmatpush2.xpose.msra.mxu0 0.0
    %587 = vmatprep.subr.mxu0 0.0
    %588 = vmatpush2.xpose.msra.mxu0 0.0
    %589 = vmatprep.subr.mxu0 0.0
    %590 = vmatpush2.xpose.msra.mxu0 0.0
    %591 = vmatprep.subr.mxu0 0.0
    %592 = vmatpush2.xpose.msra.mxu0 0.0
    %593 = vmatprep.subr.mxu0 0.0
    %594 = vmatpush2.xpose.msra.mxu0 0.0
    %595 = vmatprep.subr.mxu0 0.0
    %596 = vmatpush2.xpose.msra.mxu0 0.0
    %597 = vmatprep.subr.mxu0 0.0
    %598 = vmatpush2.xpose.msra.mxu0 0.0
    %599 = vmatprep.subr.mxu0 0.0
    %600 = vmatpush2.xpose.msra.mxu0 0.0
    %601 = vmatprep.subr.mxu0 0.0
    %602 = vmatpush2.xpose.msra.mxu0 0.0
    %603 = vmatprep.subr.mxu0 0.0
    %604 = vmatpush2.xpose.msra.mxu0 0.0
    %605 = vmatprep.mubr.f32.mxu0 0.0
    %606 = vmatmul.mubr.f32.gmra.mxu0 %v155
    %v607 = vpop.f32.mrf.mxu0
    %v608 = vadd.f32 0.0, %v607
    %v609 = vpop.f32.mrf.mxu0
    %610 = vmatprep.mubr.f32.mxu0 0.0
    %611 = vmatmul.mubr.f32.gmra.mxu0 %v156
    %v612 = vpop.f32.mrf.mxu0
    %v613 = vadd.f32 0.0, %v612
    %v614 = vpop.f32.mrf.mxu0
    %615 = vmatprep.mubr.f32.mxu0 0.0
    %616 = vmatmul.mubr.f32.gmra.mxu0 %v157
    %v617 = vpop.f32.mrf.mxu0
    %v618 = vadd.f32 0.0, %v617
    %v619 = vpop.f32.mrf.mxu0
    %620 = vmatprep.mubr.f32.mxu0 0.0
    %621 = vmatmul.mubr.f32.gmra.mxu0 %v158
    %v622 = vpop.f32.mrf.mxu0
    %v623 = vadd.f32 0.0, %v622
    %v624 = vpop.f32.mrf.mxu0
    %625 = vmatprep.mubr.f32.mxu0 0.0
    %626 = vmatmul.mubr.f32.gmra.mxu0 %v159
    %v627 = vpop.f32.mrf.mxu0
    %v628 = vadd.f32 0.0, %v627
    %v629 = vpop.f32.mrf.mxu0
    %630 = vmatprep.mubr.f32.mxu0 0.0
    %631 = vmatmul.mubr.f32.gmra.mxu0 %v160
    %v632 = vpop.f32.mrf.mxu0
    %v633 = vadd.f32 0.0, %v632
    %v634 = vpop.f32.mrf.mxu0
    %635 = vmatprep.mubr.f32.mxu0 0.0
    %636 = vmatmul.mubr.f32.gmra.mxu0 %v161
    %v637 = vpop.f32.mrf.mxu0
    %v638 = vadd.f32 0.0, %v637
    %v639 = vpop.f32.mrf.mxu0
    %640 = vmatprep.mubr.f32.mxu0 0.0
    %641 = vmatmul.mubr.f32.gmra.mxu0 %v162
    %v642 = vpop.f32.mrf.mxu0
    %v643 = vadd.f32 0.0, %v642
    %v644 = vpop.f32.mrf.mxu0
    %645 = vmatprep.mubr.f32.mxu0 0.0
    %646 = vmatmul.mubr.f32.gmra.mxu0 %v163
    %v647 = vpop.f32.mrf.mxu0
    %v648 = vadd.f32 0.0, %v647
    %v649 = vpop.f32.mrf.mxu0
    %650 = vmatprep.mubr.f32.mxu0 0.0
    %651 = vmatmul.mubr.f32.gmra.mxu0 %v164
    %v652 = vpop.f32.mrf.mxu0
    %v653 = vadd.f32 0.0, %v652
    %v654 = vpop.f32.mrf.mxu0
    %655 = vmatprep.mubr.f32.mxu0 0.0
    %656 = vmatmul.mubr.f32.gmra.mxu0 %v165
    %v657 = vpop.f32.mrf.mxu0
    %v658 = vadd.f32 0.0, %v657
    %v659 = vpop.f32.mrf.mxu0
    %660 = vmatprep.mubr.f32.mxu0 0.0
    %661 = vmatmul.mubr.f32.gmra.mxu0 %v166
    %v662 = vpop.f32.mrf.mxu0
    %v663 = vadd.f32 0.0, %v662
    %v664 = vpop.f32.mrf.mxu0
    %665 = vmatprep.mubr.f32.mxu0 0.0
    %666 = vmatmul.mubr.f32.gmra.mxu0 %v167
    %v667 = vpop.f32.mrf.mxu0
    %v668 = vadd.f32 0.0, %v667
    %v669 = vpop.f32.mrf.mxu0
    %670 = vmatprep.mubr.f32.mxu0 0.0
    %671 = vmatmul.mubr.f32.gmra.mxu0 %v168
    %v672 = vpop.f32.mrf.mxu0
    %v673 = vadd.f32 0.0, %v672
    %v674 = vpop.f32.mrf.mxu0
    %675 = vmatprep.mubr.f32.mxu0 0.0
    %676 = vmatmul.mubr.f32.gmra.mxu0 %v169
    %v677 = vpop.f32.mrf.mxu0
    %v678 = vadd.f32 0.0, %v677
    %v679 = vpop.f32.mrf.mxu0
    %680 = vmatprep.mubr.f32.mxu0 0.0
    %681 = vmatmul.mubr.f32.gmra.mxu0 %v170
    %v682 = vpop.f32.mrf.mxu0
    %v683 = vadd.f32 0.0, %v682
    %v684 = vpop.f32.mrf.mxu0
    %685 = vdwg.mxu0
    %686 = vmatprep.subr.mxu0 0.0
    %687 = vmatpush1.xpose.msra.mxu0 %v250
    %688 = vmatprep.subr.mxu0 0.0
    %689 = vmatpush1.xpose.msra.mxu0 %v249
    %690 = vmatprep.subr.mxu0 0.0
    %691 = vmatpush1.xpose.msra.mxu0 %v248
    %692 = vmatprep.subr.mxu0 0.0
    %693 = vmatpush1.xpose.msra.mxu0 %v247
    %694 = vmatprep.subr.mxu0 0.0
    %695 = vmatpush1.xpose.msra.mxu0 %v246
    %696 = vmatprep.subr.mxu0 0.0
    %697 = vmatpush1.xpose.msra.mxu0 %v245
    %698 = vmatprep.subr.mxu0 0.0
    %699 = vmatpush1.xpose.msra.mxu0 %v244
    %700 = vmatprep.subr.mxu0 0.0
    %701 = vmatpush1.xpose.msra.mxu0 %v243
    %702 = vmatprep.subr.mxu0 0.0
    %703 = vmatpush1.xpose.msra.mxu0 %v242
    %704 = vmatprep.subr.mxu0 0.0
    %705 = vmatpush1.xpose.msra.mxu0 %v241
    %706 = vmatprep.subr.mxu0 0.0
    %707 = vmatpush1.xpose.msra.mxu0 %v240
    %708 = vmatprep.subr.mxu0 0.0
    %709 = vmatpush1.xpose.msra.mxu0 %v239
    %710 = vmatprep.subr.mxu0 0.0
    %711 = vmatpush1.xpose.msra.mxu0 %v238
    %712 = vmatprep.subr.mxu0 0.0
    %713 = vmatpush1.xpose.msra.mxu0 %v237
    %714 = vmatprep.subr.mxu0 0.0
    %715 = vmatpush1.xpose.msra.mxu0 %v236
    %716 = vmatprep.subr.mxu0 0.0
    %717 = vmatpush1.xpose.msra.mxu0 %v235
    %718 = vmatprep.subr.mxu0 0.0
    %719 = vmatpush2.xpose.msra.mxu0 0.0
    %720 = vmatprep.subr.mxu0 0.0
    %721 = vmatpush2.xpose.msra.mxu0 0.0
    %722 = vmatprep.subr.mxu0 0.0
    %723 = vmatpush2.xpose.msra.mxu0 0.0
    %724 = vmatprep.subr.mxu0 0.0
    %725 = vmatpush2.xpose.msra.mxu0 0.0
    %726 = vmatprep.subr.mxu0 0.0
    %727 = vmatpush2.xpose.msra.mxu0 0.0
    %728 = vmatprep.subr.mxu0 0.0
    %729 = vmatpush2.xpose.msra.mxu0 0.0
    %730 = vmatprep.subr.mxu0 0.0
    %731 = vmatpush2.xpose.msra.mxu0 0.0
    %732 = vmatprep.subr.mxu0 0.0
    %733 = vmatpush2.xpose.msra.mxu0 0.0
    %734 = vmatprep.subr.mxu0 0.0
    %735 = vmatpush2.xpose.msra.mxu0 0.0
    %736 = vmatprep.subr.mxu0 0.0
    %737 = vmatpush2.xpose.msra.mxu0 0.0
    %738 = vmatprep.subr.mxu0 0.0
    %739 = vmatpush2.xpose.msra.mxu0 0.0
    %740 = vmatprep.subr.mxu0 0.0
    %741 = vmatpush2.xpose.msra.mxu0 0.0
    %742 = vmatprep.subr.mxu0 0.0
    %743 = vmatpush2.xpose.msra.mxu0 0.0
    %744 = vmatprep.subr.mxu0 0.0
    %745 = vmatpush2.xpose.msra.mxu0 0.0
    %746 = vmatprep.subr.mxu0 0.0
    %747 = vmatpush2.xpose.msra.mxu0 0.0
    %748 = vmatprep.subr.mxu0 0.0
    %749 = vmatpush2.xpose.msra.mxu0 0.0
    %750 = vmatprep.mubr.f32.mxu0 0.0
    %751 = vmatmul.mubr.f32.gmra.mxu0 %v171
    %v752 = vpop.f32.mrf.mxu0
    %v753 = vadd.f32 0.0, %v752
    %v754 = vpop.f32.mrf.mxu0
    %755 = vmatprep.mubr.f32.mxu0 0.0
    %756 = vmatmul.mubr.f32.gmra.mxu0 %v172
    %v757 = vpop.f32.mrf.mxu0
    %v758 = vadd.f32 0.0, %v757
    %v759 = vpop.f32.mrf.mxu0
    %760 = vmatprep.mubr.f32.mxu0 0.0
    %761 = vmatmul.mubr.f32.gmra.mxu0 %v173
    %v762 = vpop.f32.mrf.mxu0
    %v763 = vadd.f32 0.0, %v762
    %v764 = vpop.f32.mrf.mxu0
    %765 = vmatprep.mubr.f32.mxu0 0.0
    %766 = vmatmul.mubr.f32.gmra.mxu0 %v174
    %v767 = vpop.f32.mrf.mxu0
    %v768 = vadd.f32 0.0, %v767
    %v769 = vpop.f32.mrf.mxu0
    %770 = vmatprep.mubr.f32.mxu0 0.0
    %771 = vmatmul.mubr.f32.gmra.mxu0 %v175
    %v772 = vpop.f32.mrf.mxu0
    %v773 = vadd.f32 0.0, %v772
    %v774 = vpop.f32.mrf.mxu0
    %775 = vmatprep.mubr.f32.mxu0 0.0
    %776 = vmatmul.mubr.f32.gmra.mxu0 %v176
    %v777 = vpop.f32.mrf.mxu0
    %v778 = vadd.f32 0.0, %v777
    %v779 = vpop.f32.mrf.mxu0
    %780 = vmatprep.mubr.f32.mxu0 0.0
    %781 = vmatmul.mubr.f32.gmra.mxu0 %v177
    %v782 = vpop.f32.mrf.mxu0
    %v783 = vadd.f32 0.0, %v782
    %v784 = vpop.f32.mrf.mxu0
    %785 = vmatprep.mubr.f32.mxu0 0.0
    %786 = vmatmul.mubr.f32.gmra.mxu0 %v178
    %v787 = vpop.f32.mrf.mxu0
    %v788 = vadd.f32 0.0, %v787
    %v789 = vpop.f32.mrf.mxu0
    %790 = vmatprep.mubr.f32.mxu0 0.0
    %791 = vmatmul.mubr.f32.gmra.mxu0 %v179
    %v792 = vpop.f32.mrf.mxu0
    %v793 = vadd.f32 0.0, %v792
    %v794 = vpop.f32.mrf.mxu0
    %795 = vmatprep.mubr.f32.mxu0 0.0
    %796 = vmatmul.mubr.f32.gmra.mxu0 %v180
    %v797 = vpop.f32.mrf.mxu0
    %v798 = vadd.f32 0.0, %v797
    %v799 = vpop.f32.mrf.mxu0
    %800 = vmatprep.mubr.f32.mxu0 0.0
    %801 = vmatmul.mubr.f32.gmra.mxu0 %v181
    %v802 = vpop.f32.mrf.mxu0
    %v803 = vadd.f32 0.0, %v802
    %v804 = vpop.f32.mrf.mxu0
    %805 = vmatprep.mubr.f32.mxu0 0.0
    %806 = vmatmul.mubr.f32.gmra.mxu0 %v182
    %v807 = vpop.f32.mrf.mxu0
    %v808 = vadd.f32 0.0, %v807
    %v809 = vpop.f32.mrf.mxu0
    %810 = vmatprep.mubr.f32.mxu0 0.0
    %811 = vmatmul.mubr.f32.gmra.mxu0 %v183
    %v812 = vpop.f32.mrf.mxu0
    %v813 = vadd.f32 0.0, %v812
    %v814 = vpop.f32.mrf.mxu0
    %815 = vmatprep.mubr.f32.mxu0 0.0
    %816 = vmatmul.mubr.f32.gmra.mxu0 %v184
    %v817 = vpop.f32.mrf.mxu0
    %v818 = vadd.f32 0.0, %v817
    %v819 = vpop.f32.mrf.mxu0
    %820 = vmatprep.mubr.f32.mxu0 0.0
    %821 = vmatmul.mubr.f32.gmra.mxu0 %v185
    %v822 = vpop.f32.mrf.mxu0
    %v823 = vadd.f32 0.0, %v822
    %v824 = vpop.f32.mrf.mxu0
    %825 = vmatprep.mubr.f32.mxu0 0.0
    %826 = vmatmul.mubr.f32.gmra.mxu0 %v186
    %v827 = vpop.f32.mrf.mxu0
    %v828 = vadd.f32 0.0, %v827
    %v829 = vpop.f32.mrf.mxu0
    %830 = vdwg.mxu0
    %v831 = vld [vmem:[#allocation7] sm:$0xff]
    %v832 = vld [vmem:[#allocation7 + $0x8] sm:$0xff]
    %v833 = vld [vmem:[#allocation7 + $0x10] sm:$0xff]
    %v834 = vld [vmem:[#allocation7 + $0x18] sm:$0xff]
    %v835 = vld [vmem:[#allocation7 + $0x20] sm:$0xff]
    %v836 = vld [vmem:[#allocation7 + $0x28] sm:$0xff]
    %v837 = vld [vmem:[#allocation7 + $0x30] sm:$0xff]
    %v838 = vld [vmem:[#allocation7 + $0x38] sm:$0xff]
    %v839 = vld [vmem:[#allocation7 + $0x40] sm:$0xff]
    %v840 = vld [vmem:[#allocation7 + $0x48] sm:$0xff]
    %v841 = vld [vmem:[#allocation7 + $0x50] sm:$0xff]
    %v842 = vld [vmem:[#allocation7 + $0x58] sm:$0xff]
    %v843 = vld [vmem:[#allocation7 + $0x60] sm:$0xff]
    %v844 = vld [vmem:[#allocation7 + $0x68] sm:$0xff]
    %v845 = vld [vmem:[#allocation7 + $0x70] sm:$0xff]
    %v846 = vld [vmem:[#allocation7 + $0x78] sm:$0xff]
    %v847 = vld [vmem:[#allocation7 + $0x80] sm:$0xff]
    %v848 = vld [vmem:[#allocation7 + $0x88] sm:$0xff]
    %v849 = vld [vmem:[#allocation7 + $0x90] sm:$0xff]
    %v850 = vld [vmem:[#allocation7 + $0x98] sm:$0xff]
    %v851 = vld [vmem:[#allocation7 + $0xa0] sm:$0xff]
    %v852 = vld [vmem:[#allocation7 + $0xa8] sm:$0xff]
    %v853 = vld [vmem:[#allocation7 + $0xb0] sm:$0xff]
    %v854 = vld [vmem:[#allocation7 + $0xb8] sm:$0xff]
    %v855 = vld [vmem:[#allocation7 + $0xc0] sm:$0xff]
    %v856 = vld [vmem:[#allocation7 + $0xc8] sm:$0xff]
    %v857 = vld [vmem:[#allocation7 + $0xd0] sm:$0xff]
    %v858 = vld [vmem:[#allocation7 + $0xd8] sm:$0xff]
    %v859 = vld [vmem:[#allocation7 + $0xe0] sm:$0xff]
    %v860 = vld [vmem:[#allocation7 + $0xe8] sm:$0xff]
    %v861 = vld [vmem:[#allocation7 + $0xf0] sm:$0xff]
    %v862 = vld [vmem:[#allocation7 + $0xf8] sm:$0xff]
    %v863 = vld [vmem:[#allocation7 + $0x100] sm:$0xff]
    %v864 = vld [vmem:[#allocation7 + $0x108] sm:$0xff]
    %v865 = vld [vmem:[#allocation7 + $0x110] sm:$0xff]
    %v866 = vld [vmem:[#allocation7 + $0x118] sm:$0xff]
    %v867 = vld [vmem:[#allocation7 + $0x120] sm:$0xff]
    %v868 = vld [vmem:[#allocation7 + $0x128] sm:$0xff]
    %v869 = vld [vmem:[#allocation7 + $0x130] sm:$0xff]
    %v870 = vld [vmem:[#allocation7 + $0x138] sm:$0xff]
    %v871 = vld [vmem:[#allocation7 + $0x140] sm:$0xff]
    %v872 = vld [vmem:[#allocation7 + $0x148] sm:$0xff]
    %v873 = vld [vmem:[#allocation7 + $0x150] sm:$0xff]
    %v874 = vld [vmem:[#allocation7 + $0x158] sm:$0xff]
    %v875 = vld [vmem:[#allocation7 + $0x160] sm:$0xff]
    %v876 = vld [vmem:[#allocation7 + $0x168] sm:$0xff]
    %v877 = vld [vmem:[#allocation7 + $0x170] sm:$0xff]
    %v878 = vld [vmem:[#allocation7 + $0x178] sm:$0xff]
    %v879 = vld [vmem:[#allocation7 + $0x180] sm:$0xff]
    %v880 = vld [vmem:[#allocation7 + $0x188] sm:$0xff]
    %v881 = vld [vmem:[#allocation7 + $0x190] sm:$0xff]
    %v882 = vld [vmem:[#allocation7 + $0x198] sm:$0xff]
    %v883 = vld [vmem:[#allocation7 + $0x1a0] sm:$0xff]
    %v884 = vld [vmem:[#allocation7 + $0x1a8] sm:$0xff]
    %v885 = vld [vmem:[#allocation7 + $0x1b0] sm:$0xff]
    %v886 = vld [vmem:[#allocation7 + $0x1b8] sm:$0xff]
    %v887 = vld [vmem:[#allocation7 + $0x1c0] sm:$0xff]
    %v888 = vld [vmem:[#allocation7 + $0x1c8] sm:$0xff]
    %v889 = vld [vmem:[#allocation7 + $0x1d0] sm:$0xff]
    %v890 = vld [vmem:[#allocation7 + $0x1d8] sm:$0xff]
    %v891 = vld [vmem:[#allocation7 + $0x1e0] sm:$0xff]
    %v892 = vld [vmem:[#allocation7 + $0x1e8] sm:$0xff]
    %v893 = vld [vmem:[#allocation7 + $0x1f0] sm:$0xff]
    %v894 = vld [vmem:[#allocation7 + $0x1f8] sm:$0xff]
    %895 = vmax.xlane.f32.xlu0 %v318
    %v896 = vpop.xlane.xlu0 %895
    %897 = vmax.xlane.f32.xlu0 %v323
    %v898 = vpop.xlane.xlu0 %897
    %899 = vmax.xlane.f32.xlu0 %v328
    %v900 = vpop.xlane.xlu0 %899
    %901 = vmax.xlane.f32.xlu0 %v333
    %v902 = vpop.xlane.xlu0 %901
    %903 = vmax.xlane.f32.xlu0 %v338
    %v904 = vpop.xlane.xlu0 %903
    %905 = vmax.xlane.f32.xlu0 %v343
    %v906 = vpop.xlane.xlu0 %905
    %907 = vmax.xlane.f32.xlu0 %v348
    %v908 = vpop.xlane.xlu0 %907
    %909 = vmax.xlane.f32.xlu0 %v353
    %v910 = vpop.xlane.xlu0 %909
    %911 = vmax.xlane.f32.xlu0 %v358
    %v912 = vpop.xlane.xlu0 %911
    %913 = vmax.xlane.f32.xlu0 %v363
    %v914 = vpop.xlane.xlu0 %913
    %915 = vmax.xlane.f32.xlu0 %v368
    %v916 = vpop.xlane.xlu0 %915
    %917 = vmax.xlane.f32.xlu0 %v373
    %v918 = vpop.xlane.xlu0 %917
    %919 = vmax.xlane.f32.xlu0 %v378
    %v920 = vpop.xlane.xlu0 %919
    %921 = vmax.xlane.f32.xlu0 %v383
    %v922 = vpop.xlane.xlu0 %921
    %923 = vmax.xlane.f32.xlu0 %v388
    %v924 = vpop.xlane.xlu0 %923
    %925 = vmax.xlane.f32.xlu0 %v393
    %v926 = vpop.xlane.xlu0 %925
    %927 = vmax.xlane.f32.xlu0 %v463
    %v928 = vpop.xlane.xlu0 %927
    %929 = vmax.xlane.f32.xlu0 %v468
    %v930 = vpop.xlane.xlu0 %929
    %931 = vmax.xlane.f32.xlu0 %v473
    %v932 = vpop.xlane.xlu0 %931
    %933 = vmax.xlane.f32.xlu0 %v478
    %v934 = vpop.xlane.xlu0 %933
    %935 = vmax.xlane.f32.xlu0 %v483
    %v936 = vpop.xlane.xlu0 %935
    %937 = vmax.xlane.f32.xlu0 %v488
    %v938 = vpop.xlane.xlu0 %937
    %939 = vmax.xlane.f32.xlu0 %v493
    %v940 = vpop.xlane.xlu0 %939
    %941 = vmax.xlane.f32.xlu0 %v498
    %v942 = vpop.xlane.xlu0 %941
    %943 = vmax.xlane.f32.xlu0 %v503
    %v944 = vpop.xlane.xlu0 %943
    %945 = vmax.xlane.f32.xlu0 %v508
    %v946 = vpop.xlane.xlu0 %945
    %947 = vmax.xlane.f32.xlu0 %v513
    %v948 = vpop.xlane.xlu0 %947
    %949 = vmax.xlane.f32.xlu0 %v518
    %v950 = vpop.xlane.xlu0 %949
    %951 = vmax.xlane.f32.xlu0 %v523
    %v952 = vpop.xlane.xlu0 %951
    %953 = vmax.xlane.f32.xlu0 %v528
    %v954 = vpop.xlane.xlu0 %953
    %955 = vmax.xlane.f32.xlu0 %v533
    %v956 = vpop.xlane.xlu0 %955
    %957 = vmax.xlane.f32.xlu0 %v538
    %v958 = vpop.xlane.xlu0 %957
    %959 = vmax.xlane.f32.xlu0 %v608
    %v960 = vpop.xlane.xlu0 %959
    %961 = vmax.xlane.f32.xlu0 %v613
    %v962 = vpop.xlane.xlu0 %961
    %963 = vmax.xlane.f32.xlu0 %v618
    %v964 = vpop.xlane.xlu0 %963
    %965 = vmax.xlane.f32.xlu0 %v623
    %v966 = vpop.xlane.xlu0 %965
    %967 = vmax.xlane.f32.xlu0 %v628
    %v968 = vpop.xlane.xlu0 %967
    %969 = vmax.xlane.f32.xlu0 %v633
    %v970 = vpop.xlane.xlu0 %969
    %971 = vmax.xlane.f32.xlu0 %v638
    %v972 = vpop.xlane.xlu0 %971
    %973 = vmax.xlane.f32.xlu0 %v643
    %v974 = vpop.xlane.xlu0 %973
    %975 = vmax.xlane.f32.xlu0 %v648
    %v976 = vpop.xlane.xlu0 %975
    %977 = vmax.xlane.f32.xlu0 %v653
    %v978 = vpop.xlane.xlu0 %977
    %979 = vmax.xlane.f32.xlu0 %v658
    %v980 = vpop.xlane.xlu0 %979
    %981 = vmax.xlane.f32.xlu0 %v663
    %v982 = vpop.xlane.xlu0 %981
    %983 = vmax.xlane.f32.xlu0 %v668
    %v984 = vpop.xlane.xlu0 %983
    %985 = vmax.xlane.f32.xlu0 %v673
    %v986 = vpop.xlane.xlu0 %985
    %987 = vmax.xlane.f32.xlu0 %v678
    %v988 = vpop.xlane.xlu0 %987
    %989 = vmax.xlane.f32.xlu0 %v683
    %v990 = vpop.xlane.xlu0 %989
    %991 = vmax.xlane.f32.xlu0 %v753
    %v992 = vpop.xlane.xlu0 %991
    %993 = vmax.xlane.f32.xlu0 %v758
    %v994 = vpop.xlane.xlu0 %993
    %995 = vmax.xlane.f32.xlu0 %v763
    %v996 = vpop.xlane.xlu0 %995
    %997 = vmax.xlane.f32.xlu0 %v768
    %v998 = vpop.xlane.xlu0 %997
    %999 = vmax.xlane.f32.xlu0 %v773
    %v1000 = vpop.xlane.xlu0 %999
    %1001 = vmax.xlane.f32.xlu0 %v778
    %v1002 = vpop.xlane.xlu0 %1001
    %1003 = vmax.xlane.f32.xlu0 %v783
    %v1004 = vpop.xlane.xlu0 %1003
    %1005 = vmax.xlane.f32.xlu0 %v788
    %v1006 = vpop.xlane.xlu0 %1005
    %1007 = vmax.xlane.f32.xlu0 %v793
    %v1008 = vpop.xlane.xlu0 %1007
    %1009 = vmax.xlane.f32.xlu0 %v798
    %v1010 = vpop.xlane.xlu0 %1009
    %1011 = vmax.xlane.f32.xlu0 %v803
    %v1012 = vpop.xlane.xlu0 %1011
    %1013 = vmax.xlane.f32.xlu0 %v808
    %v1014 = vpop.xlane.xlu0 %1013
    %1015 = vmax.xlane.f32.xlu0 %v813
    %v1016 = vpop.xlane.xlu0 %1015
    %1017 = vmax.xlane.f32.xlu0 %v818
    %v1018 = vpop.xlane.xlu0 %1017
    %1019 = vmax.xlane.f32.xlu0 %v823
    %v1020 = vpop.xlane.xlu0 %1019
    %1021 = vmax.xlane.f32.xlu0 %v828
    %v1022 = vpop.xlane.xlu0 %1021
    %v1023 = vsub.f32 %v318, %v896
    %v1024 = vsub.f32 %v323, %v898
    %v1025 = vsub.f32 %v328, %v900
    %v1026 = vsub.f32 %v333, %v902
    %v1027 = vsub.f32 %v338, %v904
    %v1028 = vsub.f32 %v343, %v906
    %v1029 = vsub.f32 %v348, %v908
    %v1030 = vsub.f32 %v353, %v910
    %v1031 = vsub.f32 %v358, %v912
    %v1032 = vsub.f32 %v363, %v914
    %v1033 = vsub.f32 %v368, %v916
    %v1034 = vsub.f32 %v373, %v918
    %v1035 = vsub.f32 %v378, %v920
    %v1036 = vsub.f32 %v383, %v922
    %v1037 = vsub.f32 %v388, %v924
    %v1038 = vsub.f32 %v393, %v926
    %v1039 = vsub.f32 %v463, %v928
    %v1040 = vsub.f32 %v468, %v930
    %v1041 = vsub.f32 %v473, %v932
    %v1042 = vsub.f32 %v478, %v934
    %v1043 = vsub.f32 %v483, %v936
    %v1044 = vsub.f32 %v488, %v938
    %v1045 = vsub.f32 %v493, %v940
    %v1046 = vsub.f32 %v498, %v942
    %v1047 = vsub.f32 %v503, %v944
    %v1048 = vsub.f32 %v508, %v946
    %v1049 = vsub.f32 %v513, %v948
    %v1050 = vsub.f32 %v518, %v950
    %v1051 = vsub.f32 %v523, %v952
    %v1052 = vsub.f32 %v528, %v954
    %v1053 = vsub.f32 %v533, %v956
    %v1054 = vsub.f32 %v538, %v958
    %v1055 = vsub.f32 %v608, %v960
    %v1056 = vsub.f32 %v613, %v962
    %v1057 = vsub.f32 %v618, %v964
    %v1058 = vsub.f32 %v623, %v966
    %v1059 = vsub.f32 %v628, %v968
    %v1060 = vsub.f32 %v633, %v970
    %v1061 = vsub.f32 %v638, %v972
    %v1062 = vsub.f32 %v643, %v974
    %v1063 = vsub.f32 %v648, %v976
    %v1064 = vsub.f32 %v653, %v978
    %v1065 = vsub.f32 %v658, %v980
    %v1066 = vsub.f32 %v663, %v982
    %v1067 = vsub.f32 %v668, %v984
    %v1068 = vsub.f32 %v673, %v986
    %v1069 = vsub.f32 %v678, %v988
    %v1070 = vsub.f32 %v683, %v990
    %v1071 = vsub.f32 %v753, %v992
    %v1072 = vsub.f32 %v758, %v994
    %v1073 = vsub.f32 %v763, %v996
    %v1074 = vsub.f32 %v768, %v998
    %v1075 = vsub.f32 %v773, %v1000
    %v1076 = vsub.f32 %v778, %v1002
    %v1077 = vsub.f32 %v783, %v1004
    %v1078 = vsub.f32 %v788, %v1006
    %v1079 = vsub.f32 %v793, %v1008
    %v1080 = vsub.f32 %v798, %v1010
    %v1081 = vsub.f32 %v803, %v1012
    %v1082 = vsub.f32 %v808, %v1014
    %v1083 = vsub.f32 %v813, %v1016
    %v1084 = vsub.f32 %v818, %v1018
    %v1085 = vsub.f32 %v823, %v1020
    %v1086 = vsub.f32 %v828, %v1022
    %v1087 = vmul.f32 %v1023, 1.442695
    %v1088 = vpow.pop %v1087
    %v1089 = vmul.f32 %v1024, 1.442695
    %v1090 = vpow.pop %v1089
    %v1091 = vmul.f32 %v1025, 1.442695
    %v1092 = vpow.pop %v1091
    %v1093 = vmul.f32 %v1026, 1.442695
    %v1094 = vpow.pop %v1093
    %v1095 = vmul.f32 %v1027, 1.442695
    %v1096 = vpow.pop %v1095
    %v1097 = vmul.f32 %v1028, 1.442695
    %v1098 = vpow.pop %v1097
    %v1099 = vmul.f32 %v1029, 1.442695
    %v1100 = vpow.pop %v1099
    %v1101 = vmul.f32 %v1030, 1.442695
    %v1102 = vpow.pop %v1101
    %v1103 = vmul.f32 %v1031, 1.442695
    %v1104 = vpow.pop %v1103
    %v1105 = vmul.f32 %v1032, 1.442695
    %v1106 = vpow.pop %v1105
    %v1107 = vmul.f32 %v1033, 1.442695
    %v1108 = vpow.pop %v1107
    %v1109 = vmul.f32 %v1034, 1.442695
    %v1110 = vpow.pop %v1109
    %v1111 = vmul.f32 %v1035, 1.442695
    %v1112 = vpow.pop %v1111
    %v1113 = vmul.f32 %v1036, 1.442695
    %v1114 = vpow.pop %v1113
    %v1115 = vmul.f32 %v1037, 1.442695
    %v1116 = vpow.pop %v1115
    %v1117 = vmul.f32 %v1038, 1.442695
    %v1118 = vpow.pop %v1117
    %v1119 = vmul.f32 %v1039, 1.442695
    %v1120 = vpow.pop %v1119
    %v1121 = vmul.f32 %v1040, 1.442695
    %v1122 = vpow.pop %v1121
    %v1123 = vmul.f32 %v1041, 1.442695
    %v1124 = vpow.pop %v1123
    %v1125 = vmul.f32 %v1042, 1.442695
    %v1126 = vpow.pop %v1125
    %v1127 = vmul.f32 %v1043, 1.442695
    %v1128 = vpow.pop %v1127
    %v1129 = vmul.f32 %v1044, 1.442695
    %v1130 = vpow.pop %v1129
    %v1131 = vmul.f32 %v1045, 1.442695
    %v1132 = vpow.pop %v1131
    %v1133 = vmul.f32 %v1046, 1.442695
    %v1134 = vpow.pop %v1133
    %v1135 = vmul.f32 %v1047, 1.442695
    %v1136 = vpow.pop %v1135
    %v1137 = vmul.f32 %v1048, 1.442695
    %v1138 = vpow.pop %v1137
    %v1139 = vmul.f32 %v1049, 1.442695
    %v1140 = vpow.pop %v1139
    %v1141 = vmul.f32 %v1050, 1.442695
    %v1142 = vpow.pop %v1141
    %v1143 = vmul.f32 %v1051, 1.442695
    %v1144 = vpow.pop %v1143
    %v1145 = vmul.f32 %v1052, 1.442695
    %v1146 = vpow.pop %v1145
    %v1147 = vmul.f32 %v1053, 1.442695
    %v1148 = vpow.pop %v1147
    %v1149 = vmul.f32 %v1054, 1.442695
    %v1150 = vpow.pop %v1149
    %v1151 = vmul.f32 %v1055, 1.442695
    %v1152 = vpow.pop %v1151
    %v1153 = vmul.f32 %v1056, 1.442695
    %v1154 = vpow.pop %v1153
    %v1155 = vmul.f32 %v1057, 1.442695
    %v1156 = vpow.pop %v1155
    %v1157 = vmul.f32 %v1058, 1.442695
    %v1158 = vpow.pop %v1157
    %v1159 = vmul.f32 %v1059, 1.442695
    %v1160 = vpow.pop %v1159
    %v1161 = vmul.f32 %v1060, 1.442695
    %v1162 = vpow.pop %v1161
    %v1163 = vmul.f32 %v1061, 1.442695
    %v1164 = vpow.pop %v1163
    %v1165 = vmul.f32 %v1062, 1.442695
    %v1166 = vpow.pop %v1165
    %v1167 = vmul.f32 %v1063, 1.442695
    %v1168 = vpow.pop %v1167
    %v1169 = vmul.f32 %v1064, 1.442695
    %v1170 = vpow.pop %v1169
    %v1171 = vmul.f32 %v1065, 1.442695
    %v1172 = vpow.pop %v1171
    %v1173 = vmul.f32 %v1066, 1.442695
    %v1174 = vpow.pop %v1173
    %v1175 = vmul.f32 %v1067, 1.442695
    %v1176 = vpow.pop %v1175
    %v1177 = vmul.f32 %v1068, 1.442695
    %v1178 = vpow.pop %v1177
    %v1179 = vmul.f32 %v1069, 1.442695
    %v1180 = vpow.pop %v1179
    %v1181 = vmul.f32 %v1070, 1.442695
    %v1182 = vpow.pop %v1181
    %v1183 = vmul.f32 %v1071, 1.442695
    %v1184 = vpow.pop %v1183
    %v1185 = vmul.f32 %v1072, 1.442695
    %v1186 = vpow.pop %v1185
    %v1187 = vmul.f32 %v1073, 1.442695
    %v1188 = vpow.pop %v1187
    %v1189 = vmul.f32 %v1074, 1.442695
    %v1190 = vpow.pop %v1189
    %v1191 = vmul.f32 %v1075, 1.442695
    %v1192 = vpow.pop %v1191
    %v1193 = vmul.f32 %v1076, 1.442695
    %v1194 = vpow.pop %v1193
    %v1195 = vmul.f32 %v1077, 1.442695
    %v1196 = vpow.pop %v1195
    %v1197 = vmul.f32 %v1078, 1.442695
    %v1198 = vpow.pop %v1197
    %v1199 = vmul.f32 %v1079, 1.442695
    %v1200 = vpow.pop %v1199
    %v1201 = vmul.f32 %v1080, 1.442695
    %v1202 = vpow.pop %v1201
    %v1203 = vmul.f32 %v1081, 1.442695
    %v1204 = vpow.pop %v1203
    %v1205 = vmul.f32 %v1082, 1.442695
    %v1206 = vpow.pop %v1205
    %v1207 = vmul.f32 %v1083, 1.442695
    %v1208 = vpow.pop %v1207
    %v1209 = vmul.f32 %v1084, 1.442695
    %v1210 = vpow.pop %v1209
    %v1211 = vmul.f32 %v1085, 1.442695
    %v1212 = vpow.pop %v1211
    %v1213 = vmul.f32 %v1086, 1.442695
    %v1214 = vpow.pop %v1213
    %1215 = vadd.xlane.f32.xlu0 %v1088
    %v1216 = vpop.xlane.xlu0 %1215
    %1217 = vadd.xlane.f32.xlu0 %v1090
    %v1218 = vpop.xlane.xlu0 %1217
    %1219 = vadd.xlane.f32.xlu0 %v1092
    %v1220 = vpop.xlane.xlu0 %1219
    %1221 = vadd.xlane.f32.xlu0 %v1094
    %v1222 = vpop.xlane.xlu0 %1221
    %1223 = vadd.xlane.f32.xlu0 %v1096
    %v1224 = vpop.xlane.xlu0 %1223
    %1225 = vadd.xlane.f32.xlu0 %v1098
    %v1226 = vpop.xlane.xlu0 %1225
    %1227 = vadd.xlane.f32.xlu0 %v1100
    %v1228 = vpop.xlane.xlu0 %1227
    %1229 = vadd.xlane.f32.xlu0 %v1102
    %v1230 = vpop.xlane.xlu0 %1229
    %1231 = vadd.xlane.f32.xlu0 %v1104
    %v1232 = vpop.xlane.xlu0 %1231
    %1233 = vadd.xlane.f32.xlu0 %v1106
    %v1234 = vpop.xlane.xlu0 %1233
    %1235 = vadd.xlane.f32.xlu0 %v1108
    %v1236 = vpop.xlane.xlu0 %1235
    %1237 = vadd.xlane.f32.xlu0 %v1110
    %v1238 = vpop.xlane.xlu0 %1237
    %1239 = vadd.xlane.f32.xlu0 %v1112
    %v1240 = vpop.xlane.xlu0 %1239
    %1241 = vadd.xlane.f32.xlu0 %v1114
    %v1242 = vpop.xlane.xlu0 %1241
    %1243 = vadd.xlane.f32.xlu0 %v1116
    %v1244 = vpop.xlane.xlu0 %1243
    %1245 = vadd.xlane.f32.xlu0 %v1118
    %v1246 = vpop.xlane.xlu0 %1245
    %1247 = vadd.xlane.f32.xlu0 %v1120
    %v1248 = vpop.xlane.xlu0 %1247
    %1249 = vadd.xlane.f32.xlu0 %v1122
    %v1250 = vpop.xlane.xlu0 %1249
    %1251 = vadd.xlane.f32.xlu0 %v1124
    %v1252 = vpop.xlane.xlu0 %1251
    %1253 = vadd.xlane.f32.xlu0 %v1126
    %v1254 = vpop.xlane.xlu0 %1253
    %1255 = vadd.xlane.f32.xlu0 %v1128
    %v1256 = vpop.xlane.xlu0 %1255
    %1257 = vadd.xlane.f32.xlu0 %v1130
    %v1258 = vpop.xlane.xlu0 %1257
    %1259 = vadd.xlane.f32.xlu0 %v1132
    %v1260 = vpop.xlane.xlu0 %1259
    %1261 = vadd.xlane.f32.xlu0 %v1134
    %v1262 = vpop.xlane.xlu0 %1261
    %1263 = vadd.xlane.f32.xlu0 %v1136
    %v1264 = vpop.xlane.xlu0 %1263
    %1265 = vadd.xlane.f32.xlu0 %v1138
    %v1266 = vpop.xlane.xlu0 %1265
    %1267 = vadd.xlane.f32.xlu0 %v1140
    %v1268 = vpop.xlane.xlu0 %1267
    %1269 = vadd.xlane.f32.xlu0 %v1142
    %v1270 = vpop.xlane.xlu0 %1269
    %1271 = vadd.xlane.f32.xlu0 %v1144
    %v1272 = vpop.xlane.xlu0 %1271
    %1273 = vadd.xlane.f32.xlu0 %v1146
    %v1274 = vpop.xlane.xlu0 %1273
    %1275 = vadd.xlane.f32.xlu0 %v1148
    %v1276 = vpop.xlane.xlu0 %1275
    %1277 = vadd.xlane.f32.xlu0 %v1150
    %v1278 = vpop.xlane.xlu0 %1277
    %1279 = vadd.xlane.f32.xlu0 %v1152
    %v1280 = vpop.xlane.xlu0 %1279
    %1281 = vadd.xlane.f32.xlu0 %v1154
    %v1282 = vpop.xlane.xlu0 %1281
    %1283 = vadd.xlane.f32.xlu0 %v1156
    %v1284 = vpop.xlane.xlu0 %1283
    %1285 = vadd.xlane.f32.xlu0 %v1158
    %v1286 = vpop.xlane.xlu0 %1285
    %1287 = vadd.xlane.f32.xlu0 %v1160
    %v1288 = vpop.xlane.xlu0 %1287
    %1289 = vadd.xlane.f32.xlu0 %v1162
    %v1290 = vpop.xlane.xlu0 %1289
    %1291 = vadd.xlane.f32.xlu0 %v1164
    %v1292 = vpop.xlane.xlu0 %1291
    %1293 = vadd.xlane.f32.xlu0 %v1166
    %v1294 = vpop.xlane.xlu0 %1293
    %1295 = vadd.xlane.f32.xlu0 %v1168
    %v1296 = vpop.xlane.xlu0 %1295
    %1297 = vadd.xlane.f32.xlu0 %v1170
    %v1298 = vpop.xlane.xlu0 %1297
    %1299 = vadd.xlane.f32.xlu0 %v1172
    %v1300 = vpop.xlane.xlu0 %1299
    %1301 = vadd.xlane.f32.xlu0 %v1174
    %v1302 = vpop.xlane.xlu0 %1301
    %1303 = vadd.xlane.f32.xlu0 %v1176
    %v1304 = vpop.xlane.xlu0 %1303
    %1305 = vadd.xlane.f32.xlu0 %v1178
    %v1306 = vpop.xlane.xlu0 %1305
    %1307 = vadd.xlane.f32.xlu0 %v1180
    %v1308 = vpop.xlane.xlu0 %1307
    %1309 = vadd.xlane.f32.xlu0 %v1182
    %v1310 = vpop.xlane.xlu0 %1309
    %1311 = vadd.xlane.f32.xlu0 %v1184
    %v1312 = vpop.xlane.xlu0 %1311
    %1313 = vadd.xlane.f32.xlu0 %v1186
    %v1314 = vpop.xlane.xlu0 %1313
    %1315 = vadd.xlane.f32.xlu0 %v1188
    %v1316 = vpop.xlane.xlu0 %1315
    %1317 = vadd.xlane.f32.xlu0 %v1190
    %v1318 = vpop.xlane.xlu0 %1317
    %1319 = vadd.xlane.f32.xlu0 %v1192
    %v1320 = vpop.xlane.xlu0 %1319
    %1321 = vadd.xlane.f32.xlu0 %v1194
    %v1322 = vpop.xlane.xlu0 %1321
    %1323 = vadd.xlane.f32.xlu0 %v1196
    %v1324 = vpop.xlane.xlu0 %1323
    %1325 = vadd.xlane.f32.xlu0 %v1198
    %v1326 = vpop.xlane.xlu0 %1325
    %1327 = vadd.xlane.f32.xlu0 %v1200
    %v1328 = vpop.xlane.xlu0 %1327
    %1329 = vadd.xlane.f32.xlu0 %v1202
    %v1330 = vpop.xlane.xlu0 %1329
    %1331 = vadd.xlane.f32.xlu0 %v1204
    %v1332 = vpop.xlane.xlu0 %1331
    %1333 = vadd.xlane.f32.xlu0 %v1206
    %v1334 = vpop.xlane.xlu0 %1333
    %1335 = vadd.xlane.f32.xlu0 %v1208
    %v1336 = vpop.xlane.xlu0 %1335
    %1337 = vadd.xlane.f32.xlu0 %v1210
    %v1338 = vpop.xlane.xlu0 %1337
    %1339 = vadd.xlane.f32.xlu0 %v1212
    %v1340 = vpop.xlane.xlu0 %1339
    %1341 = vadd.xlane.f32.xlu0 %v1214
    %v1342 = vpop.xlane.xlu0 %1341
    %v1343 = vrcp.pop %v1216
    %v1344 = vrcp.pop %v1218
    %v1345 = vrcp.pop %v1220
    %v1346 = vrcp.pop %v1222
    %v1347 = vrcp.pop %v1224
    %v1348 = vrcp.pop %v1226
    %v1349 = vrcp.pop %v1228
    %v1350 = vrcp.pop %v1230
    %v1351 = vrcp.pop %v1232
    %v1352 = vrcp.pop %v1234
    %v1353 = vrcp.pop %v1236
    %v1354 = vrcp.pop %v1238
    %v1355 = vrcp.pop %v1240
    %v1356 = vrcp.pop %v1242
    %v1357 = vrcp.pop %v1244
    %v1358 = vrcp.pop %v1246
    %v1359 = vrcp.pop %v1248
    %v1360 = vrcp.pop %v1250
    %v1361 = vrcp.pop %v1252
    %v1362 = vrcp.pop %v1254
    %v1363 = vrcp.pop %v1256
    %v1364 = vrcp.pop %v1258
    %v1365 = vrcp.pop %v1260
    %v1366 = vrcp.pop %v1262
    %v1367 = vrcp.pop %v1264
    %v1368 = vrcp.pop %v1266
    %v1369 = vrcp.pop %v1268
    %v1370 = vrcp.pop %v1270
    %v1371 = vrcp.pop %v1272
    %v1372 = vrcp.pop %v1274
    %v1373 = vrcp.pop %v1276
    %v1374 = vrcp.pop %v1278
    %v1375 = vrcp.pop %v1280
    %v1376 = vrcp.pop %v1282
    %v1377 = vrcp.pop %v1284
    %v1378 = vrcp.pop %v1286
    %v1379 = vrcp.pop %v1288
    %v1380 = vrcp.pop %v1290
    %v1381 = vrcp.pop %v1292
    %v1382 = vrcp.pop %v1294
    %v1383 = vrcp.pop %v1296
    %v1384 = vrcp.pop %v1298
    %v1385 = vrcp.pop %v1300
    %v1386 = vrcp.pop %v1302
    %v1387 = vrcp.pop %v1304
    %v1388 = vrcp.pop %v1306
    %v1389 = vrcp.pop %v1308
    %v1390 = vrcp.pop %v1310
    %v1391 = vrcp.pop %v1312
    %v1392 = vrcp.pop %v1314
    %v1393 = vrcp.pop %v1316
    %v1394 = vrcp.pop %v1318
    %v1395 = vrcp.pop %v1320
    %v1396 = vrcp.pop %v1322
    %v1397 = vrcp.pop %v1324
    %v1398 = vrcp.pop %v1326
    %v1399 = vrcp.pop %v1328
    %v1400 = vrcp.pop %v1330
    %v1401 = vrcp.pop %v1332
    %v1402 = vrcp.pop %v1334
    %v1403 = vrcp.pop %v1336
    %v1404 = vrcp.pop %v1338
    %v1405 = vrcp.pop %v1340
    %v1406 = vrcp.pop %v1342
    %v1407 = vmul.f32 %v1088, %v1343
    %v1408 = vmul.f32 %v1090, %v1344
    %v1409 = vmul.f32 %v1092, %v1345
    %v1410 = vmul.f32 %v1094, %v1346
    %v1411 = vmul.f32 %v1096, %v1347
    %v1412 = vmul.f32 %v1098, %v1348
    %v1413 = vmul.f32 %v1100, %v1349
    %v1414 = vmul.f32 %v1102, %v1350
    %v1415 = vmul.f32 %v1104, %v1351
    %v1416 = vmul.f32 %v1106, %v1352
    %v1417 = vmul.f32 %v1108, %v1353
    %v1418 = vmul.f32 %v1110, %v1354
    %v1419 = vmul.f32 %v1112, %v1355
    %v1420 = vmul.f32 %v1114, %v1356
    %v1421 = vmul.f32 %v1116, %v1357
    %v1422 = vmul.f32 %v1118, %v1358
    %v1423 = vmul.f32 %v1120, %v1359
    %v1424 = vmul.f32 %v1122, %v1360
    %v1425 = vmul.f32 %v1124, %v1361
    %v1426 = vmul.f32 %v1126, %v1362
    %v1427 = vmul.f32 %v1128, %v1363
    %v1428 = vmul.f32 %v1130, %v1364
    %v1429 = vmul.f32 %v1132, %v1365
    %v1430 = vmul.f32 %v1134, %v1366
    %v1431 = vmul.f32 %v1136, %v1367
    %v1432 = vmul.f32 %v1138, %v1368
    %v1433 = vmul.f32 %v1140, %v1369
    %v1434 = vmul.f32 %v1142, %v1370
    %v1435 = vmul.f32 %v1144, %v1371
    %v1436 = vmul.f32 %v1146, %v1372
    %v1437 = vmul.f32 %v1148, %v1373
    %v1438 = vmul.f32 %v1150, %v1374
    %v1439 = vmul.f32 %v1152, %v1375
    %v1440 = vmul.f32 %v1154, %v1376
    %v1441 = vmul.f32 %v1156, %v1377
    %v1442 = vmul.f32 %v1158, %v1378
    %v1443 = vmul.f32 %v1160, %v1379
    %v1444 = vmul.f32 %v1162, %v1380
    %v1445 = vmul.f32 %v1164, %v1381
    %v1446 = vmul.f32 %v1166, %v1382
    %v1447 = vmul.f32 %v1168, %v1383
    %v1448 = vmul.f32 %v1170, %v1384
    %v1449 = vmul.f32 %v1172, %v1385
    %v1450 = vmul.f32 %v1174, %v1386
    %v1451 = vmul.f32 %v1176, %v1387
    %v1452 = vmul.f32 %v1178, %v1388
    %v1453 = vmul.f32 %v1180, %v1389
    %v1454 = vmul.f32 %v1182, %v1390
    %v1455 = vmul.f32 %v1184, %v1391
    %v1456 = vmul.f32 %v1186, %v1392
    %v1457 = vmul.f32 %v1188, %v1393
    %v1458 = vmul.f32 %v1190, %v1394
    %v1459 = vmul.f32 %v1192, %v1395
    %v1460 = vmul.f32 %v1194, %v1396
    %v1461 = vmul.f32 %v1196, %v1397
    %v1462 = vmul.f32 %v1198, %v1398
    %v1463 = vmul.f32 %v1200, %v1399
    %v1464 = vmul.f32 %v1202, %v1400
    %v1465 = vmul.f32 %v1204, %v1401
    %v1466 = vmul.f32 %v1206, %v1402
    %v1467 = vmul.f32 %v1208, %v1403
    %v1468 = vmul.f32 %v1210, %v1404
    %v1469 = vmul.f32 %v1212, %v1405
    %v1470 = vmul.f32 %v1214, %v1406
    %1471 = vmatprep.subr.mxu0 0.0
    %1472 = vmatpush1.msra.mxu0 %v846
    %1473 = vmatprep.subr.mxu0 0.0
    %1474 = vmatpush1.msra.mxu0 %v845
    %1475 = vmatprep.subr.mxu0 0.0
    %1476 = vmatpush1.msra.mxu0 %v844
    %1477 = vmatprep.subr.mxu0 0.0
    %1478 = vmatpush1.msra.mxu0 %v843
    %1479 = vmatprep.subr.mxu0 0.0
    %1480 = vmatpush1.msra.mxu0 %v842
    %1481 = vmatprep.subr.mxu0 0.0
    %1482 = vmatpush1.msra.mxu0 %v841
    %1483 = vmatprep.subr.mxu0 0.0
    %1484 = vmatpush1.msra.mxu0 %v840
    %1485 = vmatprep.subr.mxu0 0.0
    %1486 = vmatpush1.msra.mxu0 %v839
    %1487 = vmatprep.subr.mxu0 0.0
    %1488 = vmatpush1.msra.mxu0 %v838
    %1489 = vmatprep.subr.mxu0 0.0
    %1490 = vmatpush1.msra.mxu0 %v837
    %1491 = vmatprep.subr.mxu0 0.0
    %1492 = vmatpush1.msra.mxu0 %v836
    %1493 = vmatprep.subr.mxu0 0.0
    %1494 = vmatpush1.msra.mxu0 %v835
    %1495 = vmatprep.subr.mxu0 0.0
    %1496 = vmatpush1.msra.mxu0 %v834
    %1497 = vmatprep.subr.mxu0 0.0
    %1498 = vmatpush1.msra.mxu0 %v833
    %1499 = vmatprep.subr.mxu0 0.0
    %1500 = vmatpush1.msra.mxu0 %v832
    %1501 = vmatprep.subr.mxu0 0.0
    %1502 = vmatpush1.msra.mxu0 %v831
    %1503 = vmatprep.subr.mxu0 0.0
    %1504 = vmatpush2.msra.mxu0 0.0
    %1505 = vmatprep.subr.mxu0 0.0
    %1506 = vmatpush2.msra.mxu0 0.0
    %1507 = vmatprep.subr.mxu0 0.0
    %1508 = vmatpush2.msra.mxu0 0.0
    %1509 = vmatprep.subr.mxu0 0.0
    %1510 = vmatpush2.msra.mxu0 0.0
    %1511 = vmatprep.subr.mxu0 0.0
    %1512 = vmatpush2.msra.mxu0 0.0
    %1513 = vmatprep.subr.mxu0 0.0
    %1514 = vmatpush2.msra.mxu0 0.0
    %1515 = vmatprep.subr.mxu0 0.0
    %1516 = vmatpush2.msra.mxu0 0.0
    %1517 = vmatprep.subr.mxu0 0.0
    %1518 = vmatpush2.msra.mxu0 0.0
    %1519 = vmatprep.subr.mxu0 0.0
    %1520 = vmatpush2.msra.mxu0 0.0
    %1521 = vmatprep.subr.mxu0 0.0
    %1522 = vmatpush2.msra.mxu0 0.0
    %1523 = vmatprep.subr.mxu0 0.0
    %1524 = vmatpush2.msra.mxu0 0.0
    %1525 = vmatprep.subr.mxu0 0.0
    %1526 = vmatpush2.msra.mxu0 0.0
    %1527 = vmatprep.subr.mxu0 0.0
    %1528 = vmatpush2.msra.mxu0 0.0
    %1529 = vmatprep.subr.mxu0 0.0
    %1530 = vmatpush2.msra.mxu0 0.0
    %1531 = vmatprep.subr.mxu0 0.0
    %1532 = vmatpush2.msra.mxu0 0.0
    %1533 = vmatprep.subr.mxu0 0.0
    %1534 = vmatpush2.msra.mxu0 0.0
    %1535 = vmatprep.mubr.f32.mxu0 0.0
    %1536 = vmatmul.mubr.f32.gmra.mxu0 %v1407
    %v1537 = vpop.f32.mrf.mxu0
    %v1538 = vadd.f32 0.0, %v1537
    %v1539 = vpop.f32.mrf.mxu0
    %1540 = vmatprep.mubr.f32.mxu0 0.0
    %1541 = vmatmul.mubr.f32.gmra.mxu0 %v1408
    %v1542 = vpop.f32.mrf.mxu0
    %v1543 = vadd.f32 0.0, %v1542
    %v1544 = vpop.f32.mrf.mxu0
    %1545 = vmatprep.mubr.f32.mxu0 0.0
    %1546 = vmatmul.mubr.f32.gmra.mxu0 %v1409
    %v1547 = vpop.f32.mrf.mxu0
    %v1548 = vadd.f32 0.0, %v1547
    %v1549 = vpop.f32.mrf.mxu0
    %1550 = vmatprep.mubr.f32.mxu0 0.0
    %1551 = vmatmul.mubr.f32.gmra.mxu0 %v1410
    %v1552 = vpop.f32.mrf.mxu0
    %v1553 = vadd.f32 0.0, %v1552
    %v1554 = vpop.f32.mrf.mxu0
    %1555 = vmatprep.mubr.f32.mxu0 0.0
    %1556 = vmatmul.mubr.f32.gmra.mxu0 %v1411
    %v1557 = vpop.f32.mrf.mxu0
    %v1558 = vadd.f32 0.0, %v1557
    %v1559 = vpop.f32.mrf.mxu0
    %1560 = vmatprep.mubr.f32.mxu0 0.0
    %1561 = vmatmul.mubr.f32.gmra.mxu0 %v1412
    %v1562 = vpop.f32.mrf.mxu0
    %v1563 = vadd.f32 0.0, %v1562
    %v1564 = vpop.f32.mrf.mxu0
    %1565 = vmatprep.mubr.f32.mxu0 0.0
    %1566 = vmatmul.mubr.f32.gmra.mxu0 %v1413
    %v1567 = vpop.f32.mrf.mxu0
    %v1568 = vadd.f32 0.0, %v1567
    %v1569 = vpop.f32.mrf.mxu0
    %1570 = vmatprep.mubr.f32.mxu0 0.0
    %1571 = vmatmul.mubr.f32.gmra.mxu0 %v1414
    %v1572 = vpop.f32.mrf.mxu0
    %v1573 = vadd.f32 0.0, %v1572
    %v1574 = vpop.f32.mrf.mxu0
    %1575 = vmatprep.mubr.f32.mxu0 0.0
    %1576 = vmatmul.mubr.f32.gmra.mxu0 %v1415
    %v1577 = vpop.f32.mrf.mxu0
    %v1578 = vadd.f32 0.0, %v1577
    %v1579 = vpop.f32.mrf.mxu0
    %1580 = vmatprep.mubr.f32.mxu0 0.0
    %1581 = vmatmul.mubr.f32.gmra.mxu0 %v1416
    %v1582 = vpop.f32.mrf.mxu0
    %v1583 = vadd.f32 0.0, %v1582
    %v1584 = vpop.f32.mrf.mxu0
    %1585 = vmatprep.mubr.f32.mxu0 0.0
    %1586 = vmatmul.mubr.f32.gmra.mxu0 %v1417
    %v1587 = vpop.f32.mrf.mxu0
    %v1588 = vadd.f32 0.0, %v1587
    %v1589 = vpop.f32.mrf.mxu0
    %1590 = vmatprep.mubr.f32.mxu0 0.0
    %1591 = vmatmul.mubr.f32.gmra.mxu0 %v1418
    %v1592 = vpop.f32.mrf.mxu0
    %v1593 = vadd.f32 0.0, %v1592
    %v1594 = vpop.f32.mrf.mxu0
    %1595 = vmatprep.mubr.f32.mxu0 0.0
    %1596 = vmatmul.mubr.f32.gmra.mxu0 %v1419
    %v1597 = vpop.f32.mrf.mxu0
    %v1598 = vadd.f32 0.0, %v1597
    %v1599 = vpop.f32.mrf.mxu0
    %1600 = vmatprep.mubr.f32.mxu0 0.0
    %1601 = vmatmul.mubr.f32.gmra.mxu0 %v1420
    %v1602 = vpop.f32.mrf.mxu0
    %v1603 = vadd.f32 0.0, %v1602
    %v1604 = vpop.f32.mrf.mxu0
    %1605 = vmatprep.mubr.f32.mxu0 0.0
    %1606 = vmatmul.mubr.f32.gmra.mxu0 %v1421
    %v1607 = vpop.f32.mrf.mxu0
    %v1608 = vadd.f32 0.0, %v1607
    %v1609 = vpop.f32.mrf.mxu0
    %1610 = vmatprep.mubr.f32.mxu0 0.0
    %1611 = vmatmul.mubr.f32.gmra.mxu0 %v1422
    %v1612 = vpop.f32.mrf.mxu0
    %v1613 = vadd.f32 0.0, %v1612
    %v1614 = vpop.f32.mrf.mxu0
    %1615 = vdwg.mxu0
    %1616 = vmatprep.subr.mxu0 0.0
    %1617 = vmatpush1.msra.mxu0 %v862
    %1618 = vmatprep.subr.mxu0 0.0
    %1619 = vmatpush1.msra.mxu0 %v861
    %1620 = vmatprep.subr.mxu0 0.0
    %1621 = vmatpush1.msra.mxu0 %v860
    %1622 = vmatprep.subr.mxu0 0.0
    %1623 = vmatpush1.msra.mxu0 %v859
    %1624 = vmatprep.subr.mxu0 0.0
    %1625 = vmatpush1.msra.mxu0 %v858
    %1626 = vmatprep.subr.mxu0 0.0
    %1627 = vmatpush1.msra.mxu0 %v857
    %1628 = vmatprep.subr.mxu0 0.0
    %1629 = vmatpush1.msra.mxu0 %v856
    %1630 = vmatprep.subr.mxu0 0.0
    %1631 = vmatpush1.msra.mxu0 %v855
    %1632 = vmatprep.subr.mxu0 0.0
    %1633 = vmatpush1.msra.mxu0 %v854
    %1634 = vmatprep.subr.mxu0 0.0
    %1635 = vmatpush1.msra.mxu0 %v853
    %1636 = vmatprep.subr.mxu0 0.0
    %1637 = vmatpush1.msra.mxu0 %v852
    %1638 = vmatprep.subr.mxu0 0.0
    %1639 = vmatpush1.msra.mxu0 %v851
    %1640 = vmatprep.subr.mxu0 0.0
    %1641 = vmatpush1.msra.mxu0 %v850
    %1642 = vmatprep.subr.mxu0 0.0
    %1643 = vmatpush1.msra.mxu0 %v849
    %1644 = vmatprep.subr.mxu0 0.0
    %1645 = vmatpush1.msra.mxu0 %v848
    %1646 = vmatprep.subr.mxu0 0.0
    %1647 = vmatpush1.msra.mxu0 %v847
    %1648 = vmatprep.subr.mxu0 0.0
    %1649 = vmatpush2.msra.mxu0 0.0
    %1650 = vmatprep.subr.mxu0 0.0
    %1651 = vmatpush2.msra.mxu0 0.0
    %1652 = vmatprep.subr.mxu0 0.0
    %1653 = vmatpush2.msra.mxu0 0.0
    %1654 = vmatprep.subr.mxu0 0.0
    %1655 = vmatpush2.msra.mxu0 0.0
    %1656 = vmatprep.subr.mxu0 0.0
    %1657 = vmatpush2.msra.mxu0 0.0
    %1658 = vmatprep.subr.mxu0 0.0
    %1659 = vmatpush2.msra.mxu0 0.0
    %1660 = vmatprep.subr.mxu0 0.0
    %1661 = vmatpush2.msra.mxu0 0.0
    %1662 = vmatprep.subr.mxu0 0.0
    %1663 = vmatpush2.msra.mxu0 0.0
    %1664 = vmatprep.subr.mxu0 0.0
    %1665 = vmatpush2.msra.mxu0 0.0
    %1666 = vmatprep.subr.mxu0 0.0
    %1667 = vmatpush2.msra.mxu0 0.0
    %1668 = vmatprep.subr.mxu0 0.0
    %1669 = vmatpush2.msra.mxu0 0.0
    %1670 = vmatprep.subr.mxu0 0.0
    %1671 = vmatpush2.msra.mxu0 0.0
    %1672 = vmatprep.subr.mxu0 0.0
    %1673 = vmatpush2.msra.mxu0 0.0
    %1674 = vmatprep.subr.mxu0 0.0
    %1675 = vmatpush2.msra.mxu0 0.0
    %1676 = vmatprep.subr.mxu0 0.0
    %1677 = vmatpush2.msra.mxu0 0.0
    %1678 = vmatprep.subr.mxu0 0.0
    %1679 = vmatpush2.msra.mxu0 0.0
    %1680 = vmatprep.mubr.f32.mxu0 0.0
    %1681 = vmatmul.mubr.f32.gmra.mxu0 %v1423
    %v1682 = vpop.f32.mrf.mxu0
    %v1683 = vadd.f32 0.0, %v1682
    %v1684 = vpop.f32.mrf.mxu0
    %1685 = vmatprep.mubr.f32.mxu0 0.0
    %1686 = vmatmul.mubr.f32.gmra.mxu0 %v1424
    %v1687 = vpop.f32.mrf.mxu0
    %v1688 = vadd.f32 0.0, %v1687
    %v1689 = vpop.f32.mrf.mxu0
    %1690 = vmatprep.mubr.f32.mxu0 0.0
    %1691 = vmatmul.mubr.f32.gmra.mxu0 %v1425
    %v1692 = vpop.f32.mrf.mxu0
    %v1693 = vadd.f32 0.0, %v1692
    %v1694 = vpop.f32.mrf.mxu0
    %1695 = vmatprep.mubr.f32.mxu0 0.0
    %1696 = vmatmul.mubr.f32.gmra.mxu0 %v1426
    %v1697 = vpop.f32.mrf.mxu0
    %v1698 = vadd.f32 0.0, %v1697
    %v1699 = vpop.f32.mrf.mxu0
    %1700 = vmatprep.mubr.f32.mxu0 0.0
    %1701 = vmatmul.mubr.f32.gmra.mxu0 %v1427
    %v1702 = vpop.f32.mrf.mxu0
    %v1703 = vadd.f32 0.0, %v1702
    %v1704 = vpop.f32.mrf.mxu0
    %1705 = vmatprep.mubr.f32.mxu0 0.0
    %1706 = vmatmul.mubr.f32.gmra.mxu0 %v1428
    %v1707 = vpop.f32.mrf.mxu0
    %v1708 = vadd.f32 0.0, %v1707
    %v1709 = vpop.f32.mrf.mxu0
    %1710 = vmatprep.mubr.f32.mxu0 0.0
    %1711 = vmatmul.mubr.f32.gmra.mxu0 %v1429
    %v1712 = vpop.f32.mrf.mxu0
    %v1713 = vadd.f32 0.0, %v1712
    %v1714 = vpop.f32.mrf.mxu0
    %1715 = vmatprep.mubr.f32.mxu0 0.0
    %1716 = vmatmul.mubr.f32.gmra.mxu0 %v1430
    %v1717 = vpop.f32.mrf.mxu0
    %v1718 = vadd.f32 0.0, %v1717
    %v1719 = vpop.f32.mrf.mxu0
    %1720 = vmatprep.mubr.f32.mxu0 0.0
    %1721 = vmatmul.mubr.f32.gmra.mxu0 %v1431
    %v1722 = vpop.f32.mrf.mxu0
    %v1723 = vadd.f32 0.0, %v1722
    %v1724 = vpop.f32.mrf.mxu0
    %1725 = vmatprep.mubr.f32.mxu0 0.0
    %1726 = vmatmul.mubr.f32.gmra.mxu0 %v1432
    %v1727 = vpop.f32.mrf.mxu0
    %v1728 = vadd.f32 0.0, %v1727
    %v1729 = vpop.f32.mrf.mxu0
    %1730 = vmatprep.mubr.f32.mxu0 0.0
    %1731 = vmatmul.mubr.f32.gmra.mxu0 %v1433
    %v1732 = vpop.f32.mrf.mxu0
    %v1733 = vadd.f32 0.0, %v1732
    %v1734 = vpop.f32.mrf.mxu0
    %1735 = vmatprep.mubr.f32.mxu0 0.0
    %1736 = vmatmul.mubr.f32.gmra.mxu0 %v1434
    %v1737 = vpop.f32.mrf.mxu0
    %v1738 = vadd.f32 0.0, %v1737
    %v1739 = vpop.f32.mrf.mxu0
    %1740 = vmatprep.mubr.f32.mxu0 0.0
    %1741 = vmatmul.mubr.f32.gmra.mxu0 %v1435
    %v1742 = vpop.f32.mrf.mxu0
    %v1743 = vadd.f32 0.0, %v1742
    %v1744 = vpop.f32.mrf.mxu0
    %1745 = vmatprep.mubr.f32.mxu0 0.0
    %1746 = vmatmul.mubr.f32.gmra.mxu0 %v1436
    %v1747 = vpop.f32.mrf.mxu0
    %v1748 = vadd.f32 0.0, %v1747
    %v1749 = vpop.f32.mrf.mxu0
    %1750 = vmatprep.mubr.f32.mxu0 0.0
    %1751 = vmatmul.mubr.f32.gmra.mxu0 %v1437
    %v1752 = vpop.f32.mrf.mxu0
    %v1753 = vadd.f32 0.0, %v1752
    %v1754 = vpop.f32.mrf.mxu0
    %1755 = vmatprep.mubr.f32.mxu0 0.0
    %1756 = vmatmul.mubr.f32.gmra.mxu0 %v1438
    %v1757 = vpop.f32.mrf.mxu0
    %v1758 = vadd.f32 0.0, %v1757
    %v1759 = vpop.f32.mrf.mxu0
    %1760 = vdwg.mxu0
    %1761 = vmatprep.subr.mxu0 0.0
    %1762 = vmatpush1.msra.mxu0 %v878
    %1763 = vmatprep.subr.mxu0 0.0
    %1764 = vmatpush1.msra.mxu0 %v877
    %1765 = vmatprep.subr.mxu0 0.0
    %1766 = vmatpush1.msra.mxu0 %v876
    %1767 = vmatprep.subr.mxu0 0.0
    %1768 = vmatpush1.msra.mxu0 %v875
    %1769 = vmatprep.subr.mxu0 0.0
    %1770 = vmatpush1.msra.mxu0 %v874
    %1771 = vmatprep.subr.mxu0 0.0
    %1772 = vmatpush1.msra.mxu0 %v873
    %1773 = vmatprep.subr.mxu0 0.0
    %1774 = vmatpush1.msra.mxu0 %v872
    %1775 = vmatprep.subr.mxu0 0.0
    %1776 = vmatpush1.msra.mxu0 %v871
    %1777 = vmatprep.subr.mxu0 0.0
    %1778 = vmatpush1.msra.mxu0 %v870
    %1779 = vmatprep.subr.mxu0 0.0
    %1780 = vmatpush1.msra.mxu0 %v869
    %1781 = vmatprep.subr.mxu0 0.0
    %1782 = vmatpush1.msra.mxu0 %v868
    %1783 = vmatprep.subr.mxu0 0.0
    %1784 = vmatpush1.msra.mxu0 %v867
    %1785 = vmatprep.subr.mxu0 0.0
    %1786 = vmatpush1.msra.mxu0 %v866
    %1787 = vmatprep.subr.mxu0 0.0
    %1788 = vmatpush1.msra.mxu0 %v865
    %1789 = vmatprep.subr.mxu0 0.0
    %1790 = vmatpush1.msra.mxu0 %v864
    %1791 = vmatprep.subr.mxu0 0.0
    %1792 = vmatpush1.msra.mxu0 %v863
    %1793 = vmatprep.subr.mxu0 0.0
    %1794 = vmatpush2.msra.mxu0 0.0
    %1795 = vmatprep.subr.mxu0 0.0
    %1796 = vmatpush2.msra.mxu0 0.0
    %1797 = vmatprep.subr.mxu0 0.0
    %1798 = vmatpush2.msra.mxu0 0.0
    %1799 = vmatprep.subr.mxu0 0.0
    %1800 = vmatpush2.msra.mxu0 0.0
    %1801 = vmatprep.subr.mxu0 0.0
    %1802 = vmatpush2.msra.mxu0 0.0
    %1803 = vmatprep.subr.mxu0 0.0
    %1804 = vmatpush2.msra.mxu0 0.0
    %1805 = vmatprep.subr.mxu0 0.0
    %1806 = vmatpush2.msra.mxu0 0.0
    %1807 = vmatprep.subr.mxu0 0.0
    %1808 = vmatpush2.msra.mxu0 0.0
    %1809 = vmatprep.subr.mxu0 0.0
    %1810 = vmatpush2.msra.mxu0 0.0
    %1811 = vmatprep.subr.mxu0 0.0
    %1812 = vmatpush2.msra.mxu0 0.0
    %1813 = vmatprep.subr.mxu0 0.0
    %1814 = vmatpush2.msra.mxu0 0.0
    %1815 = vmatprep.subr.mxu0 0.0
    %1816 = vmatpush2.msra.mxu0 0.0
    %1817 = vmatprep.subr.mxu0 0.0
    %1818 = vmatpush2.msra.mxu0 0.0
    %1819 = vmatprep.subr.mxu0 0.0
    %1820 = vmatpush2.msra.mxu0 0.0
    %1821 = vmatprep.subr.mxu0 0.0
    %1822 = vmatpush2.msra.mxu0 0.0
    %1823 = vmatprep.subr.mxu0 0.0
    %1824 = vmatpush2.msra.mxu0 0.0
    %1825 = vmatprep.mubr.f32.mxu0 0.0
    %1826 = vmatmul.mubr.f32.gmra.mxu0 %v1439
    %v1827 = vpop.f32.mrf.mxu0
    %v1828 = vadd.f32 0.0, %v1827
    %v1829 = vpop.f32.mrf.mxu0
    %1830 = vmatprep.mubr.f32.mxu0 0.0
    %1831 = vmatmul.mubr.f32.gmra.mxu0 %v1440
    %v1832 = vpop.f32.mrf.mxu0
    %v1833 = vadd.f32 0.0, %v1832
    %v1834 = vpop.f32.mrf.mxu0
    %1835 = vmatprep.mubr.f32.mxu0 0.0
    %1836 = vmatmul.mubr.f32.gmra.mxu0 %v1441
    %v1837 = vpop.f32.mrf.mxu0
    %v1838 = vadd.f32 0.0, %v1837
    %v1839 = vpop.f32.mrf.mxu0
    %1840 = vmatprep.mubr.f32.mxu0 0.0
    %1841 = vmatmul.mubr.f32.gmra.mxu0 %v1442
    %v1842 = vpop.f32.mrf.mxu0
    %v1843 = vadd.f32 0.0, %v1842
    %v1844 = vpop.f32.mrf.mxu0
    %1845 = vmatprep.mubr.f32.mxu0 0.0
    %1846 = vmatmul.mubr.f32.gmra.mxu0 %v1443
    %v1847 = vpop.f32.mrf.mxu0
    %v1848 = vadd.f32 0.0, %v1847
    %v1849 = vpop.f32.mrf.mxu0
    %1850 = vmatprep.mubr.f32.mxu0 0.0
    %1851 = vmatmul.mubr.f32.gmra.mxu0 %v1444
    %v1852 = vpop.f32.mrf.mxu0
    %v1853 = vadd.f32 0.0, %v1852
    %v1854 = vpop.f32.mrf.mxu0
    %1855 = vmatprep.mubr.f32.mxu0 0.0
    %1856 = vmatmul.mubr.f32.gmra.mxu0 %v1445
    %v1857 = vpop.f32.mrf.mxu0
    %v1858 = vadd.f32 0.0, %v1857
    %v1859 = vpop.f32.mrf.mxu0
    %1860 = vmatprep.mubr.f32.mxu0 0.0
    %1861 = vmatmul.mubr.f32.gmra.mxu0 %v1446
    %v1862 = vpop.f32.mrf.mxu0
    %v1863 = vadd.f32 0.0, %v1862
    %v1864 = vpop.f32.mrf.mxu0
    %1865 = vmatprep.mubr.f32.mxu0 0.0
    %1866 = vmatmul.mubr.f32.gmra.mxu0 %v1447
    %v1867 = vpop.f32.mrf.mxu0
    %v1868 = vadd.f32 0.0, %v1867
    %v1869 = vpop.f32.mrf.mxu0
    %1870 = vmatprep.mubr.f32.mxu0 0.0
    %1871 = vmatmul.mubr.f32.gmra.mxu0 %v1448
    %v1872 = vpop.f32.mrf.mxu0
    %v1873 = vadd.f32 0.0, %v1872
    %v1874 = vpop.f32.mrf.mxu0
    %1875 = vmatprep.mubr.f32.mxu0 0.0
    %1876 = vmatmul.mubr.f32.gmra.mxu0 %v1449
    %v1877 = vpop.f32.mrf.mxu0
    %v1878 = vadd.f32 0.0, %v1877
    %v1879 = vpop.f32.mrf.mxu0
    %1880 = vmatprep.mubr.f32.mxu0 0.0
    %1881 = vmatmul.mubr.f32.gmra.mxu0 %v1450
    %v1882 = vpop.f32.mrf.mxu0
    %v1883 = vadd.f32 0.0, %v1882
    %v1884 = vpop.f32.mrf.mxu0
    %1885 = vmatprep.mubr.f32.mxu0 0.0
    %1886 = vmatmul.mubr.f32.gmra.mxu0 %v1451
    %v1887 = vpop.f32.mrf.mxu0
    %v1888 = vadd.f32 0.0, %v1887
    %v1889 = vpop.f32.mrf.mxu0
    %1890 = vmatprep.mubr.f32.mxu0 0.0
    %1891 = vmatmul.mubr.f32.gmra.mxu0 %v1452
    %v1892 = vpop.f32.mrf.mxu0
    %v1893 = vadd.f32 0.0, %v1892
    %v1894 = vpop.f32.mrf.mxu0
    %1895 = vmatprep.mubr.f32.mxu0 0.0
    %1896 = vmatmul.mubr.f32.gmra.mxu0 %v1453
    %v1897 = vpop.f32.mrf.mxu0
    %v1898 = vadd.f32 0.0, %v1897
    %v1899 = vpop.f32.mrf.mxu0
    %1900 = vmatprep.mubr.f32.mxu0 0.0
    %1901 = vmatmul.mubr.f32.gmra.mxu0 %v1454
    %v1902 = vpop.f32.mrf.mxu0
    %v1903 = vadd.f32 0.0, %v1902
    %v1904 = vpop.f32.mrf.mxu0
    %1905 = vdwg.mxu0
    %1906 = vmatprep.subr.mxu0 0.0
    %1907 = vmatpush1.msra.mxu0 %v894
    %1908 = vmatprep.subr.mxu0 0.0
    %1909 = vmatpush1.msra.mxu0 %v893
    %1910 = vmatprep.subr.mxu0 0.0
    %1911 = vmatpush1.msra.mxu0 %v892
    %1912 = vmatprep.subr.mxu0 0.0
    %1913 = vmatpush1.msra.mxu0 %v891
    %1914 = vmatprep.subr.mxu0 0.0
    %1915 = vmatpush1.msra.mxu0 %v890
    %1916 = vmatprep.subr.mxu0 0.0
    %1917 = vmatpush1.msra.mxu0 %v889
    %1918 = vmatprep.subr.mxu0 0.0
    %1919 = vmatpush1.msra.mxu0 %v888
    %1920 = vmatprep.subr.mxu0 0.0
    %1921 = vmatpush1.msra.mxu0 %v887
    %1922 = vmatprep.subr.mxu0 0.0
    %1923 = vmatpush1.msra.mxu0 %v886
    %1924 = vmatprep.subr.mxu0 0.0
    %1925 = vmatpush1.msra.mxu0 %v885
    %1926 = vmatprep.subr.mxu0 0.0
    %1927 = vmatpush1.msra.mxu0 %v884
    %1928 = vmatprep.subr.mxu0 0.0
    %1929 = vmatpush1.msra.mxu0 %v883
    %1930 = vmatprep.subr.mxu0 0.0
    %1931 = vmatpush1.msra.mxu0 %v882
    %1932 = vmatprep.subr.mxu0 0.0
    %1933 = vmatpush1.msra.mxu0 %v881
    %1934 = vmatprep.subr.mxu0 0.0
    %1935 = vmatpush1.msra.mxu0 %v880
    %1936 = vmatprep.subr.mxu0 0.0
    %1937 = vmatpush1.msra.mxu0 %v879
    %1938 = vmatprep.subr.mxu0 0.0
    %1939 = vmatpush2.msra.mxu0 0.0
    %1940 = vmatprep.subr.mxu0 0.0
    %1941 = vmatpush2.msra.mxu0 0.0
    %1942 = vmatprep.subr.mxu0 0.0
    %1943 = vmatpush2.msra.mxu0 0.0
    %1944 = vmatprep.subr.mxu0 0.0
    %1945 = vmatpush2.msra.mxu0 0.0
    %1946 = vmatprep.subr.mxu0 0.0
    %1947 = vmatpush2.msra.mxu0 0.0
    %1948 = vmatprep.subr.mxu0 0.0
    %1949 = vmatpush2.msra.mxu0 0.0
    %1950 = vmatprep.subr.mxu0 0.0
    %1951 = vmatpush2.msra.mxu0 0.0
    %1952 = vmatprep.subr.mxu0 0.0
    %1953 = vmatpush2.msra.mxu0 0.0
    %1954 = vmatprep.subr.mxu0 0.0
    %1955 = vmatpush2.msra.mxu0 0.0
    %1956 = vmatprep.subr.mxu0 0.0
    %1957 = vmatpush2.msra.mxu0 0.0
    %1958 = vmatprep.subr.mxu0 0.0
    %1959 = vmatpush2.msra.mxu0 0.0
    %1960 = vmatprep.subr.mxu0 0.0
    %1961 = vmatpush2.msra.mxu0 0.0
    %1962 = vmatprep.subr.mxu0 0.0
    %1963 = vmatpush2.msra.mxu0 0.0
    %1964 = vmatprep.subr.mxu0 0.0
    %1965 = vmatpush2.msra.mxu0 0.0
    %1966 = vmatprep.subr.mxu0 0.0
    %1967 = vmatpush2.msra.mxu0 0.0
    %1968 = vmatprep.subr.mxu0 0.0
    %1969 = vmatpush2.msra.mxu0 0.0
    %1970 = vmatprep.mubr.f32.mxu0 0.0
    %1971 = vmatmul.mubr.f32.gmra.mxu0 %v1455
    %v1972 = vpop.f32.mrf.mxu0
    %v1973 = vadd.f32 0.0, %v1972
    %v1974 = vpop.f32.mrf.mxu0
    %1975 = vmatprep.mubr.f32.mxu0 0.0
    %1976 = vmatmul.mubr.f32.gmra.mxu0 %v1456
    %v1977 = vpop.f32.mrf.mxu0
    %v1978 = vadd.f32 0.0, %v1977
    %v1979 = vpop.f32.mrf.mxu0
    %1980 = vmatprep.mubr.f32.mxu0 0.0
    %1981 = vmatmul.mubr.f32.gmra.mxu0 %v1457
    %v1982 = vpop.f32.mrf.mxu0
    %v1983 = vadd.f32 0.0, %v1982
    %v1984 = vpop.f32.mrf.mxu0
    %1985 = vmatprep.mubr.f32.mxu0 0.0
    %1986 = vmatmul.mubr.f32.gmra.mxu0 %v1458
    %v1987 = vpop.f32.mrf.mxu0
    %v1988 = vadd.f32 0.0, %v1987
    %v1989 = vpop.f32.mrf.mxu0
    %1990 = vmatprep.mubr.f32.mxu0 0.0
    %1991 = vmatmul.mubr.f32.gmra.mxu0 %v1459
    %v1992 = vpop.f32.mrf.mxu0
    %v1993 = vadd.f32 0.0, %v1992
    %v1994 = vpop.f32.mrf.mxu0
    %1995 = vmatprep.mubr.f32.mxu0 0.0
    %1996 = vmatmul.mubr.f32.gmra.mxu0 %v1460
    %v1997 = vpop.f32.mrf.mxu0
    %v1998 = vadd.f32 0.0, %v1997
    %v1999 = vpop.f32.mrf.mxu0
    %2000 = vmatprep.mubr.f32.mxu0 0.0
    %2001 = vmatmul.mubr.f32.gmra.mxu0 %v1461
    %v2002 = vpop.f32.mrf.mxu0
    %v2003 = vadd.f32 0.0, %v2002
    %v2004 = vpop.f32.mrf.mxu0
    %2005 = vmatprep.mubr.f32.mxu0 0.0
    %2006 = vmatmul.mubr.f32.gmra.mxu0 %v1462
    %v2007 = vpop.f32.mrf.mxu0
    %v2008 = vadd.f32 0.0, %v2007
    %v2009 = vpop.f32.mrf.mxu0
    %2010 = vmatprep.mubr.f32.mxu0 0.0
    %2011 = vmatmul.mubr.f32.gmra.mxu0 %v1463
    %v2012 = vpop.f32.mrf.mxu0
    %v2013 = vadd.f32 0.0, %v2012
    %v2014 = vpop.f32.mrf.mxu0
    %2015 = vmatprep.mubr.f32.mxu0 0.0
    %2016 = vmatmul.mubr.f32.gmra.mxu0 %v1464
    %v2017 = vpop.f32.mrf.mxu0
    %v2018 = vadd.f32 0.0, %v2017
    %v2019 = vpop.f32.mrf.mxu0
    %2020 = vmatprep.mubr.f32.mxu0 0.0
    %2021 = vmatmul.mubr.f32.gmra.mxu0 %v1465
    %v2022 = vpop.f32.mrf.mxu0
    %v2023 = vadd.f32 0.0, %v2022
    %v2024 = vpop.f32.mrf.mxu0
    %2025 = vmatprep.mubr.f32.mxu0 0.0
    %2026 = vmatmul.mubr.f32.gmra.mxu0 %v1466
    %v2027 = vpop.f32.mrf.mxu0
    %v2028 = vadd.f32 0.0, %v2027
    %v2029 = vpop.f32.mrf.mxu0
    %2030 = vmatprep.mubr.f32.mxu0 0.0
    %2031 = vmatmul.mubr.f32.gmra.mxu0 %v1467
    %v2032 = vpop.f32.mrf.mxu0
    %v2033 = vadd.f32 0.0, %v2032
    %v2034 = vpop.f32.mrf.mxu0
    %2035 = vmatprep.mubr.f32.mxu0 0.0
    %2036 = vmatmul.mubr.f32.gmra.mxu0 %v1468
    %v2037 = vpop.f32.mrf.mxu0
    %v2038 = vadd.f32 0.0, %v2037
    %v2039 = vpop.f32.mrf.mxu0
    %2040 = vmatprep.mubr.f32.mxu0 0.0
    %2041 = vmatmul.mubr.f32.gmra.mxu0 %v1469
    %v2042 = vpop.f32.mrf.mxu0
    %v2043 = vadd.f32 0.0, %v2042
    %v2044 = vpop.f32.mrf.mxu0
    %2045 = vmatprep.mubr.f32.mxu0 0.0
    %2046 = vmatmul.mubr.f32.gmra.mxu0 %v1470
    %v2047 = vpop.f32.mrf.mxu0
    %v2048 = vadd.f32 0.0, %v2047
    %v2049 = vpop.f32.mrf.mxu0
    %2050 = vdwg.mxu0
    %2051 = vst [vmem:[#allocation9] sm:$0xff] %v1407
    %2052 = vst [vmem:[#allocation9 + $0x8] sm:$0xff] %v1408
    %2053 = vst [vmem:[#allocation9 + $0x10] sm:$0xff] %v1409
    %2054 = vst [vmem:[#allocation9 + $0x18] sm:$0xff] %v1410
    %2055 = vst [vmem:[#allocation9 + $0x20] sm:$0xff] %v1411
    %2056 = vst [vmem:[#allocation9 + $0x28] sm:$0xff] %v1412
    %2057 = vst [vmem:[#allocation9 + $0x30] sm:$0xff] %v1413
    %2058 = vst [vmem:[#allocation9 + $0x38] sm:$0xff] %v1414
    %2059 = vst [vmem:[#allocation9 + $0x40] sm:$0xff] %v1415
    %2060 = vst [vmem:[#allocation9 + $0x48] sm:$0xff] %v1416
    %2061 = vst [vmem:[#allocation9 + $0x50] sm:$0xff] %v1417
    %2062 = vst [vmem:[#allocation9 + $0x58] sm:$0xff] %v1418
    %2063 = vst [vmem:[#allocation9 + $0x60] sm:$0xff] %v1419
    %2064 = vst [vmem:[#allocation9 + $0x68] sm:$0xff] %v1420
    %2065 = vst [vmem:[#allocation9 + $0x70] sm:$0xff] %v1421
    %2066 = vst [vmem:[#allocation9 + $0x78] sm:$0xff] %v1422
    %2067 = vst [vmem:[#allocation9 + $0x80] sm:$0xff] %v1423
    %2068 = vst [vmem:[#allocation9 + $0x88] sm:$0xff] %v1424
    %2069 = vst [vmem:[#allocation9 + $0x90] sm:$0xff] %v1425
    %2070 = vst [vmem:[#allocation9 + $0x98] sm:$0xff] %v1426
    %2071 = vst [vmem:[#allocation9 + $0xa0] sm:$0xff] %v1427
    %2072 = vst [vmem:[#allocation9 + $0xa8] sm:$0xff] %v1428
    %2073 = vst [vmem:[#allocation9 + $0xb0] sm:$0xff] %v1429
    %2074 = vst [vmem:[#allocation9 + $0xb8] sm:$0xff] %v1430
    %2075 = vst [vmem:[#allocation9 + $0xc0] sm:$0xff] %v1431
    %2076 = vst [vmem:[#allocation9 + $0xc8] sm:$0xff] %v1432
    %2077 = vst [vmem:[#allocation9 + $0xd0] sm:$0xff] %v1433
    %2078 = vst [vmem:[#allocation9 + $0xd8] sm:$0xff] %v1434
    %2079 = vst [vmem:[#allocation9 + $0xe0] sm:$0xff] %v1435
    %2080 = vst [vmem:[#allocation9 + $0xe8] sm:$0xff] %v1436
    %2081 = vst [vmem:[#allocation9 + $0xf0] sm:$0xff] %v1437
    %2082 = vst [vmem:[#allocation9 + $0xf8] sm:$0xff] %v1438
    %2083 = vst [vmem:[#allocation9 + $0x100] sm:$0xff] %v1439
    %2084 = vst [vmem:[#allocation9 + $0x108] sm:$0xff] %v1440
    %2085 = vst [vmem:[#allocation9 + $0x110] sm:$0xff] %v1441
    %2086 = vst [vmem:[#allocation9 + $0x118] sm:$0xff] %v1442
    %2087 = vst [vmem:[#allocation9 + $0x120] sm:$0xff] %v1443
    %2088 = vst [vmem:[#allocation9 + $0x128] sm:$0xff] %v1444
    %2089 = vst [vmem:[#allocation9 + $0x130] sm:$0xff] %v1445
    %2090 = vst [vmem:[#allocation9 + $0x138] sm:$0xff] %v1446
    %2091 = vst [vmem:[#allocation9 + $0x140] sm:$0xff] %v1447
    %2092 = vst [vmem:[#allocation9 + $0x148] sm:$0xff] %v1448
    %2093 = vst [vmem:[#allocation9 + $0x150] sm:$0xff] %v1449
    %2094 = vst [vmem:[#allocation9 + $0x158] sm:$0xff] %v1450
    %2095 = vst [vmem:[#allocation9 + $0x160] sm:$0xff] %v1451
    %2096 = vst [vmem:[#allocation9 + $0x168] sm:$0xff] %v1452
    %2097 = vst [vmem:[#allocation9 + $0x170] sm:$0xff] %v1453
    %2098 = vst [vmem:[#allocation9 + $0x178] sm:$0xff] %v1454
    %2099 = vst [vmem:[#allocation9 + $0x180] sm:$0xff] %v1455
    %2100 = vst [vmem:[#allocation9 + $0x188] sm:$0xff] %v1456
    %2101 = vst [vmem:[#allocation9 + $0x190] sm:$0xff] %v1457
    %2102 = vst [vmem:[#allocation9 + $0x198] sm:$0xff] %v1458
    %2103 = vst [vmem:[#allocation9 + $0x1a0] sm:$0xff] %v1459
    %2104 = vst [vmem:[#allocation9 + $0x1a8] sm:$0xff] %v1460
    %2105 = vst [vmem:[#allocation9 + $0x1b0] sm:$0xff] %v1461
    %2106 = vst [vmem:[#allocation9 + $0x1b8] sm:$0xff] %v1462
    %2107 = vst [vmem:[#allocation9 + $0x1c0] sm:$0xff] %v1463
    %2108 = vst [vmem:[#allocation9 + $0x1c8] sm:$0xff] %v1464
    %2109 = vst [vmem:[#allocation9 + $0x1d0] sm:$0xff] %v1465
    %2110 = vst [vmem:[#allocation9 + $0x1d8] sm:$0xff] %v1466
    %2111 = vst [vmem:[#allocation9 + $0x1e0] sm:$0xff] %v1467
    %2112 = vst [vmem:[#allocation9 + $0x1e8] sm:$0xff] %v1468
    %2113 = vst [vmem:[#allocation9 + $0x1f0] sm:$0xff] %v1469
    %2114 = vst [vmem:[#allocation9 + $0x1f8] sm:$0xff] %v1470
    %2115 = vst [vmem:[#allocation8] sm:$0xff] %v1538
    %2116 = vst [vmem:[#allocation8 + $0x8] sm:$0xff] %v1543
    %2117 = vst [vmem:[#allocation8 + $0x10] sm:$0xff] %v1548
    %2118 = vst [vmem:[#allocation8 + $0x18] sm:$0xff] %v1553
    %2119 = vst [vmem:[#allocation8 + $0x20] sm:$0xff] %v1558
    %2120 = vst [vmem:[#allocation8 + $0x28] sm:$0xff] %v1563
    %2121 = vst [vmem:[#allocation8 + $0x30] sm:$0xff] %v1568
    %2122 = vst [vmem:[#allocation8 + $0x38] sm:$0xff] %v1573
    %2123 = vst [vmem:[#allocation8 + $0x40] sm:$0xff] %v1578
    %2124 = vst [vmem:[#allocation8 + $0x48] sm:$0xff] %v1583
    %2125 = vst [vmem:[#allocation8 + $0x50] sm:$0xff] %v1588
    %2126 = vst [vmem:[#allocation8 + $0x58] sm:$0xff] %v1593
    %2127 = vst [vmem:[#allocation8 + $0x60] sm:$0xff] %v1598
    %2128 = vst [vmem:[#allocation8 + $0x68] sm:$0xff] %v1603
    %2129 = vst [vmem:[#allocation8 + $0x70] sm:$0xff] %v1608
    %2130 = vst [vmem:[#allocation8 + $0x78] sm:$0xff] %v1613
    %2131 = vst [vmem:[#allocation8 + $0x80] sm:$0xff] %v1683
    %2132 = vst [vmem:[#allocation8 + $0x88] sm:$0xff] %v1688
    %2133 = vst [vmem:[#allocation8 + $0x90] sm:$0xff] %v1693
    %2134 = vst [vmem:[#allocation8 + $0x98] sm:$0xff] %v1698
    %2135 = vst [vmem:[#allocation8 + $0xa0] sm:$0xff] %v1703
    %2136 = vst [vmem:[#allocation8 + $0xa8] sm:$0xff] %v1708
    %2137 = vst [vmem:[#allocation8 + $0xb0] sm:$0xff] %v1713
    %2138 = vst [vmem:[#allocation8 + $0xb8] sm:$0xff] %v1718
    %2139 = vst [vmem:[#allocation8 + $0xc0] sm:$0xff] %v1723
    %2140 = vst [vmem:[#allocation8 + $0xc8] sm:$0xff] %v1728
    %2141 = vst [vmem:[#allocation8 + $0xd0] sm:$0xff] %v1733
    %2142 = vst [vmem:[#allocation8 + $0xd8] sm:$0xff] %v1738
    %2143 = vst [vmem:[#allocation8 + $0xe0] sm:$0xff] %v1743
    %2144 = vst [vmem:[#allocation8 + $0xe8] sm:$0xff] %v1748
    %2145 = vst [vmem:[#allocation8 + $0xf0] sm:$0xff] %v1753
    %2146 = vst [vmem:[#allocation8 + $0xf8] sm:$0xff] %v1758
    %2147 = vst [vmem:[#allocation8 + $0x100] sm:$0xff] %v1828
    %2148 = vst [vmem:[#allocation8 + $0x108] sm:$0xff] %v1833
    %2149 = vst [vmem:[#allocation8 + $0x110] sm:$0xff] %v1838
    %2150 = vst [vmem:[#allocation8 + $0x118] sm:$0xff] %v1843
    %2151 = vst [vmem:[#allocation8 + $0x120] sm:$0xff] %v1848
    %2152 = vst [vmem:[#allocation8 + $0x128] sm:$0xff] %v1853
    %2153 = vst [vmem:[#allocation8 + $0x130] sm:$0xff] %v1858
    %2154 = vst [vmem:[#allocation8 + $0x138] sm:$0xff] %v1863
    %2155 = vst [vmem:[#allocation8 + $0x140] sm:$0xff] %v1868
    %2156 = vst [vmem:[#allocation8 + $0x148] sm:$0xff] %v1873
    %2157 = vst [vmem:[#allocation8 + $0x150] sm:$0xff] %v1878
    %2158 = vst [vmem:[#allocation8 + $0x158] sm:$0xff] %v1883
    %2159 = vst [vmem:[#allocation8 + $0x160] sm:$0xff] %v1888
    %2160 = vst [vmem:[#allocation8 + $0x168] sm:$0xff] %v1893
    %2161 = vst [vmem:[#allocation8 + $0x170] sm:$0xff] %v1898
    %2162 = vst [vmem:[#allocation8 + $0x178] sm:$0xff] %v1903
    %2163 = vst [vmem:[#allocation8 + $0x180] sm:$0xff] %v1973
    %2164 = vst [vmem:[#allocation8 + $0x188] sm:$0xff] %v1978
    %2165 = vst [vmem:[#allocation8 + $0x190] sm:$0xff] %v1983
    %2166 = vst [vmem:[#allocation8 + $0x198] sm:$0xff] %v1988
    %2167 = vst [vmem:[#allocation8 + $0x1a0] sm:$0xff] %v1993
    %2168 = vst [vmem:[#allocation8 + $0x1a8] sm:$0xff] %v1998
    %2169 = vst [vmem:[#allocation8 + $0x1b0] sm:$0xff] %v2003
    %2170 = vst [vmem:[#allocation8 + $0x1b8] sm:$0xff] %v2008
    %2171 = vst [vmem:[#allocation8 + $0x1c0] sm:$0xff] %v2013
    %2172 = vst [vmem:[#allocation8 + $0x1c8] sm:$0xff] %v2018
    %2173 = vst [vmem:[#allocation8 + $0x1d0] sm:$0xff] %v2023
    %2174 = vst [vmem:[#allocation8 + $0x1d8] sm:$0xff] %v2028
    %2175 = vst [vmem:[#allocation8 + $0x1e0] sm:$0xff] %v2033
    %2176 = vst [vmem:[#allocation8 + $0x1e8] sm:$0xff] %v2038
    %2177 = vst [vmem:[#allocation8 + $0x1f0] sm:$0xff] %v2043
    %2178 = vst [vmem:[#allocation8 + $0x1f8] sm:$0xff] %v2048
    // Predicated region
    $region26: #{tpu_custom_call.1} parent=1 // pred_check
      _
    $region27: #{tpu_custom_call.1} parent=1 // pred_check_branch
      %2180 = sbr.rel (0) target = $region29
    $region28: #{tpu_custom_call.1} parent=1 // pred_region
      %s2182 = ssub.s32 8192, 8192
      %2183 = vsyncadd [#allocation4], %s2182
      %s2184 = sshll.u32 [#allocation8], 4
      %s2185 = int_to_ptr.vmem [resolvable:$true] %s2184
      %2190 = dma.vmem_to_hbm [thread:$0]  %s2185, 8192, %s3, [#allocation4], 128, 128, 8
    $region29: #{tpu_custom_call.1} parent=1 // pred_fallthru
      _
    // Predicated region
    $region30: #{tpu_custom_call.1} parent=1 // pred_check
      _
    $region31: #{tpu_custom_call.1} parent=1 // pred_check_branch
      %2192 = sbr.rel (0) target = $region33
    $region32: #{tpu_custom_call.1} parent=1 // pred_region
      %s2194 = ssub.s32 8192, 8192
      %2195 = vsyncadd [#allocation10], %s2194
      %s2196 = sshll.u32 [#allocation9], 4
      %s2197 = int_to_ptr.vmem [resolvable:$true] %s2196
      %2202 = dma.vmem_to_hbm [thread:$0]  %s2197, 8192, %s4, [#allocation10], 128, 128, 8
    $region33: #{tpu_custom_call.1} parent=1 // pred_fallthru
      _
    // Predicated region
    $region34: #{tpu_custom_call.1} parent=1 // pred_check
      _
    $region35: #{tpu_custom_call.1} parent=1 // pred_check_branch
      %2204 = sbr.rel (0) target = $region37
    $region36: #{tpu_custom_call.1} parent=1 // pred_region
      %2205 = dma.done [#allocation4], 8192
    $region37: #{tpu_custom_call.1} parent=1 // pred_fallthru
      _
    // Predicated region
    $region38: #{tpu_custom_call.1} parent=1 // pred_check
      _
    $region39: #{tpu_custom_call.1} parent=1 // pred_check_branch
      %2207 = sbr.rel (0) target = $region41
    $region40: #{tpu_custom_call.1} parent=1 // pred_region
      %2208 = dma.done [#allocation10], 8192
    $region41: #{tpu_custom_call.1} parent=1 // pred_fallthru
      _
    %2209 = vsyncpa [#allocation3], 1
    %2210 = vsyncpa [#allocation6], 1
    %2211 = vsyncpa [#allocation4], 1
    %2212 = vsyncpa [#allocation10], 1

</llo_original>
